<compile_context>
chip_gen: v5e
topology: v5e:2x2
jax: 0.10.0
libtpu: 0.0.40
codegen_flags: <defaults>
</compile_context>

<pallas_src>
import math

import jax
import jax.numpy as jnp
import numpy as np
from jax.experimental import pallas as pl
from jax.experimental.pallas import tpu as pltpu


_LANE = 128

# Abramowitz & Stegun 4.4.45: arccos(x) ~ sqrt(1-x) * poly(x), x in [0, 1],
# absolute error <= 2e-8.  Uses only sqrt/mul/add (Mosaic-safe on v5e/v6e/v7x).
_ACOS_COEFFS = (
    1.5707963050, -0.2145988016, 0.0889789874, -0.0501743046,
    0.0308918810, -0.0170881256, 0.0066700901, -0.0012624911,
)


def _acos_unit(x):
    """arccos(x) for x in [0, 1), avoiding atan/atan2/acos lowering entirely."""
    p = _ACOS_COEFFS[-1]
    for c in _ACOS_COEFFS[-2::-1]:
        p = p * x + c
    return jnp.sqrt(1.0 - x) * p


# --------------------------------------------------------------------------
# Kernel 1: quaternion moment matrices
# --------------------------------------------------------------------------
def _moments_kernel(a_ref, qt_ref, out_m_ref):
    # a_ref:     (1, N, C)     vote activations
    # qt_ref:    (1, 4, N, C)  quaternion components as lane-dense (N, C) slabs
    # out_m_ref: (1, 16, C)    row-major 4x4 moment matrix per capsule
    f32 = jnp.float32
    act = a_ref[0].astype(f32)                               # (N, C)
    q = [qt_ref[0, i].astype(f32) for i in range(4)]         # 4 x (N, C)

    mom = {}
    for i in range(4):
        aqi = act * q[i]
        for j in range(i, 4):
            mom[(i, j)] = jnp.sum(aqi * q[j], axis=0, keepdims=True)  # (1, C)

    rows = [mom[(min(i, j), max(i, j))] for i in range(4) for j in range(4)]
    out_m_ref[0] = jnp.concatenate(rows, axis=0).astype(out_m_ref.dtype)


# --------------------------------------------------------------------------
# Kernel 2: geodesic-distance attention + out_f (the single pass over V)
# --------------------------------------------------------------------------
def _attention_kernel(qt_ref, kt_ref, v_ref, out_f_ref, att_ref):
    # qt_ref:    (1, 4, N, C)   quaternion votes (resident across the F axis)
    # kt_ref:    (1, 4, C)      "average" quaternion K, lane-dense
    # v_ref:     (1, N, C, tF)  current F tile of the feature votes
    # out_f_ref: (1, C, tF)     attention-weighted mean of features (this tile)
    # att_ref:   (N, C) f32 VMEM scratch, persists across the F grid axis
    @pl.when(pl.program_id(1) == 0)
    def _():
        f32 = jnp.float32
        kq = kt_ref[0].astype(f32)                           # (4, C)
        dots = (qt_ref[0, 0].astype(f32) * kq[0:1]
                + qt_ref[0, 1].astype(f32) * kq[1:2]
                + qt_ref[0, 2].astype(f32) * kq[2:3]
                + qt_ref[0, 3].astype(f32) * kq[3:4])        # (N, C)
        x = jnp.minimum(jnp.abs(dots), 0.9999)               # max-clamp only
        dist = (2.0 / math.pi) * _acos_unit(x)
        inv = 1.0 / dist            # exact divide: these are softmax logits
        m = jnp.max(inv, axis=0, keepdims=True)
        e = jnp.exp(inv - m)
        att_ref[...] = e / jnp.sum(e, axis=0, keepdims=True)  # once per batch

    att = att_ref[...]                                        # (N, C)
    feats = v_ref[0]                                          # (N, C, tF) tile
    n_votes = feats.shape[0]
    # bf16 V promotes to f32 in the multiply (no whole-block f32 temp).
    # TODO(synk): on v6e/v7x with bf16 V, route this through the MXU as
    # att^T (C, N) @ V (N, C*tF) with diagonal-block extraction (review #5/#6).
    out = jnp.sum(att[:, :, None] * feats, axis=0) * (1.0 / n_votes)
    out_f_ref[0] = out.astype(out_f_ref.dtype)


# --------------------------------------------------------------------------
# VMEM budgeting (padded tiles, capped below physical VMEM)
# --------------------------------------------------------------------------
def _pad(x, m):
    return ((x + m - 1) // m) * m


def _tile_bytes(block_shape, dtype):
    """Bytes of one buffered tile, including (sublane, lane) layout padding."""
    itemsize = jnp.dtype(dtype).itemsize
    sublane = {4: 8, 2: 16, 1: 32}.get(itemsize, 8)
    dims = [int(d) for d in block_shape]
    if dims:
        dims[-1] = _pad(dims[-1], _LANE)
    if len(dims) >= 2:
        dims[-2] = _pad(dims[-2], sublane)
    n = 1
    for d in dims:
        n *= d
    return n * itemsize


def _vmem_budget_bytes():
    cap = 64 * 2 ** 20                       # v7x physical VMEM (tightest case)
    try:
        cap = int(getattr(pltpu.get_tpu_info(), "vmem_capacity_bytes", cap))
    except Exception:
        pass
    return max(cap - 12 * 2 ** 20, 16 * 2 ** 20)   # headroom for internal scratch


def _attention_vmem_bytes(N, C, tf, q_dtype, v_dtype, out_dtype):
    db = 2                                    # double-buffered pipelined blocks
    return (db * _tile_bytes((1, 4, N, C), q_dtype)
            + db * _tile_bytes((1, 4, C), q_dtype)
            + db * _tile_bytes((1, N, C, tf), v_dtype)      # dominant stream
            + db * _tile_bytes((1, C, tf), out_dtype)
            + _tile_bytes((N, C), jnp.float32)              # att scratch
            + 2 * _tile_bytes((N, C, tf), jnp.float32))     # compute temps


def _choose_f_tile(N, C, F, q_dtype, v_dtype, out_dtype, budget):
    """Largest F tile (full F, else a 128-multiple divisor of F) under budget."""
    cands = [F]
    for m in range((F // _LANE) * _LANE, 0, -_LANE):
        if m != F and F % m == 0:
            cands.append(m)
    for tf in cands:
        est = _attention_vmem_bytes(N, C, tf, q_dtype, v_dtype, out_dtype)
        if est <= 0.7 * budget:
            return tf, est
    tf = cands[-1]
    # TODO(synk): for huge F not divisible by 128, add ragged-tail handling.
    return tf, _attention_vmem_bytes(N, C, tf, q_dtype, v_dtype, out_dtype)


# --------------------------------------------------------------------------
# Wrapper
# --------------------------------------------------------------------------
def pose_att_router(A, Q, V):
    """PoseAttRouter.forward.

    A: (B, N, C) activations, Q: (B, N, C, 4) quaternion votes,
    V: (B, N, C, F) feature votes (f32 or bf16; f32 accumulation in-kernel).

    Returns (out_a, out_q, out_f) matching the PyTorch module:
      out_a (B, C, 1), out_q (B, C, 4), out_f (B, C, F).
    """
    B, N, C = A.shape
    Fdim = V.shape[-1]
    budget = _vmem_budget_bytes()

    # Lane-dense quaternion layout (B, 4, N, C).  Q is 4/F the size of V, so
    # this wrapper-side transpose is cheap; it is read by both kernels.
    # TODO(synk): small-C sublane padding on V would go away if the producer
    # emitted V as (B, C, N, F) -- only worth it if that layout is free upstream.
    Qt = jnp.transpose(Q, (0, 3, 1, 2))

    # ---- kernel 1: moment matrices (one pass over A, Q) ----------------------
    mom_est = (2 * _tile_bytes((1, N, C), A.dtype)
               + 2 * _tile_bytes((1, 4, N, C), Qt.dtype)
               + 2 * _tile_bytes((1, 16, C), jnp.float32))
    moments = pl.pallas_call(
        _moments_kernel,
        out_shape=jax.ShapeDtypeStruct((B, 16, C), jnp.float32),
        grid=(B,),
        in_specs=[
            pl.BlockSpec((1, N, C), lambda b: (b, 0, 0)),
            pl.BlockSpec((1, 4, N, C), lambda b: (b, 0, 0, 0)),
        ],
        out_specs=pl.BlockSpec((1, 16, C), lambda b: (b, 0, 0)),
        compiler_params=pltpu.CompilerParams(
            dimension_semantics=("parallel",),
            vmem_limit_bytes=int(min(budget, max(2 * mom_est, 16 * 2 ** 20))),
        ),
    )(A, Qt)
    # TODO(synk): for very large N, add an N-tile grid axis here with a (16, C)
    # accumulator scratch (pl.when init at the first N tile).

    # ---- tiny 4x4 eigenproblem + out_a (XLA; O(B*C) work, not worth Pallas) --
    M = jnp.transpose(moments, (0, 2, 1)).reshape(B * C, 4, 4)
    eigs, eigvecs = jnp.linalg.eigh(M)               # ascending, like torch.symeig
    norm_max_eig = (eigs[:, -1] / jnp.sum(eigs, axis=-1)).reshape(B, C, 1)
    out_a = jax.nn.softmax(norm_max_eig, axis=1)
    # Faithful to the reference: eigvect[:, -1, :] is the last ROW of the
    # eigenvector matrix (4th component of every ascending eigenvector), NOT the
    # dominant eigenvector.  Per-eigenvector sign is solver dependent, exactly
    # as it already was for torch.symeig vs LAPACK vs eigh.
    K = eigvecs[:, 3, :].reshape(B, C, 4)
    out_q = K
    Kt = jnp.transpose(K, (0, 2, 1))                 # (B, 4, C) lane-dense

    # ---- kernel 2: geodesic attention + out_f (single, F-tiled pass over V) --
    tF, att_est = _choose_f_tile(N, C, Fdim, Qt.dtype, V.dtype, jnp.float32, budget)
    out_f = pl.pallas_call(
        _attention_kernel,
        out_shape=jax.ShapeDtypeStruct((B, C, Fdim), jnp.float32),
        grid=(B, pl.cdiv(Fdim, tF)),
        in_specs=[
            pl.BlockSpec((1, 4, N, C), lambda b, j: (b, 0, 0, 0)),   # resident in j
            pl.BlockSpec((1, 4, C), lambda b, j: (b, 0, 0)),         # resident in j
            pl.BlockSpec((1, N, C, tF), lambda b, j: (b, 0, 0, j)),  # F-tiled V
        ],
        out_specs=pl.BlockSpec((1, C, tF), lambda b, j: (b, 0, j)),
        scratch_shapes=[pltpu.VMEM((N, C), jnp.float32)],            # att weights
        compiler_params=pltpu.CompilerParams(
            # Batch across cores (v7x megacore); F sequential so the att scratch
            # computed at j == 0 is valid for every F tile of the same batch.
            dimension_semantics=("parallel", "arbitrary"),
            vmem_limit_bytes=int(min(budget, max(int(1.25 * att_est), 16 * 2 ** 20))),
        ),
    )(Qt, Kt, V)

    return out_a, out_q, out_f


# --------------------------------------------------------------------------
# Pure-JAX references for the self-test
# --------------------------------------------------------------------------
def _reference_eig(A, Q):
    B, N, C = A.shape
    outer = A[..., None, None] * (Q[..., :, None] * Q[..., None, :])
    M = outer.sum(axis=1)                                     # (B, C, 4, 4)
    eigs, eigvecs = jnp.linalg.eigh(M.reshape(B * C, 4, 4))
    norm_max = (eigs[:, -1] / eigs.sum(axis=-1)).reshape(B, C, 1)
    out_a = jax.nn.softmax(norm_max, axis=1)
    row3 = eigvecs[:, 3, :].reshape(B, C, 4)
    return out_a, row3


def _reference_out_f(Q, V, K):
    """Attention path reference, evaluated with the kernel's own K so the
    per-eigenvector sign ambiguity (inherited from torch.symeig) cancels."""
    dots = jnp.einsum("bncq,bcq->bnc", Q.astype(jnp.float32), K)
    x = jnp.minimum(jnp.abs(dots), 0.9999)
    dist = 2.0 * jnp.arccos(x) / np.pi
    att = jax.nn.softmax(1.0 / dist, axis=1)
    return jnp.mean(att[..., None] * V.astype(jnp.float32), axis=1)


if __name__ == "__main__":
    # PoseAttRouter has no learnable parameters -- only the vote tensors.
    key = jax.random.PRNGKey(0)
    B, N, C, Fdim = 2, 8, 4, 16
    ka, kq, kv = jax.random.split(key, 3)

    A = jax.nn.softmax(jax.random.normal(ka, (B, N, C)), axis=1).astype(jnp.float32)
    Q = jax.random.normal(kq, (B, N, C, 4))
    Q = (Q / jnp.linalg.norm(Q, axis=-1, keepdims=True)).astype(jnp.float32)
    # bf16 feature votes: halves the dominant HBM stream (review item #4);
    # the kernel accumulates in f32.
    V = jax.random.normal(kv, (B, N, C, Fdim)).astype(jnp.bfloat16)

    out_a, out_q, out_f = jax.block_until_ready(jax.jit(pose_att_router)(A, Q, V))

    assert out_a.shape == (B, C, 1)
    assert out_q.shape == (B, C, 4)
    assert out_f.shape == (B, C, Fdim)
    assert bool(jnp.all(jnp.isfinite(out_a)))
    assert bool(jnp.all(jnp.isfinite(out_q)))
    assert bool(jnp.all(jnp.isfinite(out_f)))

    # Eigenvalue-based output vs a plain-JAX reference built from the full
    # (never-materialized-in-kernel) outer product.
    ref_a, _ = _reference_eig(A, Q)
    np.testing.assert_allclose(np.asarray(out_a), np.asarray(ref_a),
                               rtol=2e-3, atol=2e-3)
    # out_q is a row of an orthogonal matrix -> unit norm; its per-component
    # sign is eigensolver dependent (as with torch.symeig), so only the norm
    # is asserted.
    np.testing.assert_allclose(np.asarray(jnp.linalg.norm(out_q, axis=-1)),
                               1.0, rtol=1e-3, atol=1e-3)
    # Attention/feature path vs a reference using the kernel's own K.
    ref_f = _reference_out_f(Q, V, out_q)
    np.testing.assert_allclose(np.asarray(out_f), np.asarray(ref_f),
                               rtol=5e-3, atol=5e-3)

    print("KERNEL_OK")
</pallas_src>

<mosaic_0001>
module attributes {stable_mosaic.version = 11 : i64} {
  func.func @_moments_kernel(%arg0: i32, %arg1: memref<1x8x4xf32, #tpu.memory_space<vmem>>, %arg2: memref<1x4x8x4xf32, #tpu.memory_space<vmem>>, %arg3: memref<1x16x4xf32, #tpu.memory_space<vmem>>) attributes {dimension_semantics = [#tpu.dimension_semantics<parallel>], iteration_bounds = array<i64: 2>, scalar_prefetch = 0 : i64, scratch_operands = 0 : i64, tpu.core_type = #tpu.core_type<tc>, window_params = [{transform_indices = @transform_0, window_bounds = array<i64: 1, 8, 4>}, {transform_indices = @transform_1, window_bounds = array<i64: 1, 4, 8, 4>}, {transform_indices = @transform_2, window_bounds = array<i64: 1, 16, 4>}]} {
    %c0 = arith.constant 0 : index
    %c0_0 = arith.constant 0 : index
    %c0_1 = arith.constant 0 : index
    %0 = vector.load %arg1[%c0, %c0_0, %c0_1] : memref<1x8x4xf32, #tpu.memory_space<vmem>>, vector<1x8x4xf32>
    %1 = vector.shape_cast %0 : vector<1x8x4xf32> to vector<8x4xf32>
    %c0_2 = arith.constant 0 : index
    %c0_3 = arith.constant 0 : index
    %c0_4 = arith.constant 0 : index
    %c0_5 = arith.constant 0 : index
    %2 = vector.load %arg2[%c0_2, %c0_3, %c0_4, %c0_5] : memref<1x4x8x4xf32, #tpu.memory_space<vmem>>, vector<1x1x8x4xf32>
    %3 = vector.shape_cast %2 : vector<1x1x8x4xf32> to vector<8x4xf32>
    %c0_6 = arith.constant 0 : index
    %c1 = arith.constant 1 : index
    %c0_7 = arith.constant 0 : index
    %c0_8 = arith.constant 0 : index
    %4 = vector.load %arg2[%c0_6, %c1, %c0_7, %c0_8] : memref<1x4x8x4xf32, #tpu.memory_space<vmem>>, vector<1x1x8x4xf32>
    %5 = vector.shape_cast %4 : vector<1x1x8x4xf32> to vector<8x4xf32>
    %c0_9 = arith.constant 0 : index
    %c2 = arith.constant 2 : index
    %c0_10 = arith.constant 0 : index
    %c0_11 = arith.constant 0 : index
    %6 = vector.load %arg2[%c0_9, %c2, %c0_10, %c0_11] : memref<1x4x8x4xf32, #tpu.memory_space<vmem>>, vector<1x1x8x4xf32>
    %7 = vector.shape_cast %6 : vector<1x1x8x4xf32> to vector<8x4xf32>
    %c0_12 = arith.constant 0 : index
    %c3 = arith.constant 3 : index
    %c0_13 = arith.constant 0 : index
    %c0_14 = arith.constant 0 : index
    %8 = vector.load %arg2[%c0_12, %c3, %c0_13, %c0_14] : memref<1x4x8x4xf32, #tpu.memory_space<vmem>>, vector<1x1x8x4xf32>
    %9 = vector.shape_cast %8 : vector<1x1x8x4xf32> to vector<8x4xf32>
    %10 = arith.mulf %1, %3 : vector<8x4xf32>
    %11 = arith.mulf %10, %3 : vector<8x4xf32>
    %cst = arith.constant dense<0.000000e+00> : vector<4xf32>
    %12 = vector.multi_reduction <add>, %11, %cst [0] : vector<8x4xf32> to vector<4xf32>
    %13 = vector.shape_cast %12 : vector<4xf32> to vector<1x4xf32>
    %14 = arith.mulf %10, %5 : vector<8x4xf32>
    %cst_15 = arith.constant dense<0.000000e+00> : vector<4xf32>
    %15 = vector.multi_reduction <add>, %14, %cst_15 [0] : vector<8x4xf32> to vector<4xf32>
    %16 = vector.shape_cast %15 : vector<4xf32> to vector<1x4xf32>
    %17 = arith.mulf %10, %7 : vector<8x4xf32>
    %cst_16 = arith.constant dense<0.000000e+00> : vector<4xf32>
    %18 = vector.multi_reduction <add>, %17, %cst_16 [0] : vector<8x4xf32> to vector<4xf32>
    %19 = vector.shape_cast %18 : vector<4xf32> to vector<1x4xf32>
    %20 = arith.mulf %10, %9 : vector<8x4xf32>
    %cst_17 = arith.constant dense<0.000000e+00> : vector<4xf32>
    %21 = vector.multi_reduction <add>, %20, %cst_17 [0] : vector<8x4xf32> to vector<4xf32>
    %22 = vector.shape_cast %21 : vector<4xf32> to vector<1x4xf32>
    %23 = arith.mulf %1, %5 : vector<8x4xf32>
    %24 = arith.mulf %23, %5 : vector<8x4xf32>
    %cst_18 = arith.constant dense<0.000000e+00> : vector<4xf32>
    %25 = vector.multi_reduction <add>, %24, %cst_18 [0] : vector<8x4xf32> to vector<4xf32>
    %26 = vector.shape_cast %25 : vector<4xf32> to vector<1x4xf32>
    %27 = arith.mulf %23, %7 : vector<8x4xf32>
    %cst_19 = arith.constant dense<0.000000e+00> : vector<4xf32>
    %28 = vector.multi_reduction <add>, %27, %cst_19 [0] : vector<8x4xf32> to vector<4xf32>
    %29 = vector.shape_cast %28 : vector<4xf32> to vector<1x4xf32>
    %30 = arith.mulf %23, %9 : vector<8x4xf32>
    %cst_20 = arith.constant dense<0.000000e+00> : vector<4xf32>
    %31 = vector.multi_reduction <add>, %30, %cst_20 [0] : vector<8x4xf32> to vector<4xf32>
    %32 = vector.shape_cast %31 : vector<4xf32> to vector<1x4xf32>
    %33 = arith.mulf %1, %7 : vector<8x4xf32>
    %34 = arith.mulf %33, %7 : vector<8x4xf32>
    %cst_21 = arith.constant dense<0.000000e+00> : vector<4xf32>
    %35 = vector.multi_reduction <add>, %34, %cst_21 [0] : vector<8x4xf32> to vector<4xf32>
    %36 = vector.shape_cast %35 : vector<4xf32> to vector<1x4xf32>
    %37 = arith.mulf %33, %9 : vector<8x4xf32>
    %cst_22 = arith.constant dense<0.000000e+00> : vector<4xf32>
    %38 = vector.multi_reduction <add>, %37, %cst_22 [0] : vector<8x4xf32> to vector<4xf32>
    %39 = vector.shape_cast %38 : vector<4xf32> to vector<1x4xf32>
    %40 = arith.mulf %1, %9 : vector<8x4xf32>
    %41 = arith.mulf %40, %9 : vector<8x4xf32>
    %cst_23 = arith.constant dense<0.000000e+00> : vector<4xf32>
    %42 = vector.multi_reduction <add>, %41, %cst_23 [0] : vector<8x4xf32> to vector<4xf32>
    %43 = vector.shape_cast %42 : vector<4xf32> to vector<1x4xf32>
    %44 = tpu.concatenate %13, %16, %19, %22, %16, %26, %29, %32, %19, %29, %36, %39, %22, %32, %39, %43 in 0 : vector<1x4xf32>, vector<1x4xf32>, vector<1x4xf32>, vector<1x4xf32>, vector<1x4xf32>, vector<1x4xf32>, vector<1x4xf32>, vector<1x4xf32>, vector<1x4xf32>, vector<1x4xf32>, vector<1x4xf32>, vector<1x4xf32>, vector<1x4xf32>, vector<1x4xf32>, vector<1x4xf32>, vector<1x4xf32> -> vector<16x4xf32>
    %c0_24 = arith.constant 0 : index
    %c0_25 = arith.constant 0 : index
    %c0_26 = arith.constant 0 : index
    %45 = vector.load %arg3[%c0_24, %c0_25, %c0_26] : memref<1x16x4xf32, #tpu.memory_space<vmem>>, vector<1x16x4xf32>
    %46 = vector.shape_cast %45 : vector<1x16x4xf32> to vector<16x4xf32>
    %47 = vector.shape_cast %44 : vector<16x4xf32> to vector<1x16x4xf32>
    tpu.vector_store %arg3[%c0_24, %c0_25, %c0_26], %47 {strides = array<i32>} : memref<1x16x4xf32, #tpu.memory_space<vmem>>, vector<1x16x4xf32>,
    return
  }
  func.func @transform_0(%arg0: i32) -> (i32, i32, i32) {
    %c0_i32 = arith.constant 0 : i32
    %c0_i32_0 = arith.constant 0 : i32
    %c0_i32_1 = arith.constant 0 : i32
    return %arg0, %c0_i32, %c0_i32_0 : i32, i32, i32
  }
  func.func @transform_1(%arg0: i32) -> (i32, i32, i32, i32) {
    %c0_i32 = arith.constant 0 : i32
    %c0_i32_0 = arith.constant 0 : i32
    %c0_i32_1 = arith.constant 0 : i32
    %c0_i32_2 = arith.constant 0 : i32
    return %arg0, %c0_i32, %c0_i32_0, %c0_i32_1 : i32, i32, i32, i32
  }
  func.func @transform_2(%arg0: i32) -> (i32, i32, i32) {
    %c0_i32 = arith.constant 0 : i32
    %c0_i32_0 = arith.constant 0 : i32
    %c0_i32_1 = arith.constant 0 : i32
    return %arg0, %c0_i32, %c0_i32_0 : i32, i32, i32
  }
}

module attributes {stable_mosaic.version = 11 : i64} {
  func.func @_attention_kernel(%arg0: i32, %arg1: i32, %arg2: memref<1x4x8x4xf32, #tpu.memory_space<vmem>>, %arg3: memref<1x4x4xf32, #tpu.memory_space<vmem>>, %arg4: memref<1x8x4x16xbf16, #tpu.memory_space<vmem>>, %arg5: memref<1x4x16xf32, #tpu.memory_space<vmem>>, %arg6: memref<8x4xf32, #tpu.memory_space<vmem>>) attributes {dimension_semantics = [#tpu.dimension_semantics<parallel>, #tpu.dimension_semantics<arbitrary>], iteration_bounds = array<i64: 2, 1>, scalar_prefetch = 0 : i64, scratch_operands = 1 : i64, tpu.core_type = #tpu.core_type<tc>, window_params = [{transform_indices = @transform_0, window_bounds = array<i64: 1, 4, 8, 4>}, {transform_indices = @transform_1, window_bounds = array<i64: 1, 4, 4>}, {transform_indices = @transform_2, window_bounds = array<i64: 1, 8, 4, 16>}, {transform_indices = @transform_3, window_bounds = array<i64: 1, 4, 16>}]} {
    %c0_i32 = arith.constant 0 : i32
    %0 = arith.cmpi eq, %arg1, %c0_i32 : i32
    %1 = arith.extui %0 : i1 to i32
    %c0_i32_0 = arith.constant 0 : i32
    %2 = arith.cmpi ne, %1, %c0_i32_0 : i32
    scf.if %2 {
      %c0_10 = arith.constant 0 : index
      %c0_11 = arith.constant 0 : index
      %c0_12 = arith.constant 0 : index
      %16 = vector.load %arg3[%c0_10, %c0_11, %c0_12] : memref<1x4x4xf32, #tpu.memory_space<vmem>>, vector<1x4x4xf32>
      %17 = vector.shape_cast %16 : vector<1x4x4xf32> to vector<4x4xf32>
      %c0_13 = arith.constant 0 : index
      %c0_14 = arith.constant 0 : index
      %c0_15 = arith.constant 0 : index
      %c0_16 = arith.constant 0 : index
      %18 = vector.load %arg2[%c0_13, %c0_14, %c0_15, %c0_16] : memref<1x4x8x4xf32, #tpu.memory_space<vmem>>, vector<1x1x8x4xf32>
      %19 = vector.shape_cast %18 : vector<1x1x8x4xf32> to vector<8x4xf32>
      %20 = vector.extract_strided_slice %17 {offsets = [0, 0], sizes = [1, 4], strides = [1, 1]} : vector<4x4xf32> to vector<1x4xf32>
      %21 = vector.broadcast %20 : vector<1x4xf32> to vector<8x4xf32>
      %22 = arith.mulf %19, %21 : vector<8x4xf32>
      %c0_17 = arith.constant 0 : index
      %c1 = arith.constant 1 : index
      %c0_18 = arith.constant 0 : index
      %c0_19 = arith.constant 0 : index
      %23 = vector.load %arg2[%c0_17, %c1, %c0_18, %c0_19] : memref<1x4x8x4xf32, #tpu.memory_space<vmem>>, vector<1x1x8x4xf32>
      %24 = vector.shape_cast %23 : vector<1x1x8x4xf32> to vector<8x4xf32>
      %25 = vector.extract_strided_slice %17 {offsets = [1, 0], sizes = [1, 4], strides = [1, 1]} : vector<4x4xf32> to vector<1x4xf32>
      %26 = vector.broadcast %25 : vector<1x4xf32> to vector<8x4xf32>
      %27 = arith.mulf %24, %26 : vector<8x4xf32>
      %28 = arith.addf %22, %27 : vector<8x4xf32>
      %c0_20 = arith.constant 0 : index
      %c2 = arith.constant 2 : index
      %c0_21 = arith.constant 0 : index
      %c0_22 = arith.constant 0 : index
      %29 = vector.load %arg2[%c0_20, %c2, %c0_21, %c0_22] : memref<1x4x8x4xf32, #tpu.memory_space<vmem>>, vector<1x1x8x4xf32>
      %30 = vector.shape_cast %29 : vector<1x1x8x4xf32> to vector<8x4xf32>
      %31 = vector.extract_strided_slice %17 {offsets = [2, 0], sizes = [1, 4], strides = [1, 1]} : vector<4x4xf32> to vector<1x4xf32>
      %32 = vector.broadcast %31 : vector<1x4xf32> to vector<8x4xf32>
      %33 = arith.mulf %30, %32 : vector<8x4xf32>
      %34 = arith.addf %28, %33 : vector<8x4xf32>
      %c0_23 = arith.constant 0 : index
      %c3 = arith.constant 3 : index
      %c0_24 = arith.constant 0 : index
      %c0_25 = arith.constant 0 : index
      %35 = vector.load %arg2[%c0_23, %c3, %c0_24, %c0_25] : memref<1x4x8x4xf32, #tpu.memory_space<vmem>>, vector<1x1x8x4xf32>
      %36 = vector.shape_cast %35 : vector<1x1x8x4xf32> to vector<8x4xf32>
      %37 = vector.extract_strided_slice %17 {offsets = [3, 0], sizes = [1, 4], strides = [1, 1]} : vector<4x4xf32> to vector<1x4xf32>
      %38 = vector.broadcast %37 : vector<1x4xf32> to vector<8x4xf32>
      %39 = arith.mulf %36, %38 : vector<8x4xf32>
      %40 = arith.addf %34, %39 : vector<8x4xf32>
      %41 = math.absf %40 : vector<8x4xf32>
      %cst_26 = arith.constant 0.999899983 : f32
      %42 = vector.broadcast %cst_26 : f32 to vector<8x4xf32>
      %43 = arith.minimumf %41, %42 : vector<8x4xf32>
      %cst_27 = arith.constant -0.0012624911 : f32
      %44 = vector.broadcast %cst_27 : f32 to vector<8x4xf32>
      %45 = arith.mulf %44, %43 : vector<8x4xf32>
      %cst_28 = arith.constant 6.670090e-03 : f32
      %46 = vector.broadcast %cst_28 : f32 to vector<8x4xf32>
      %47 = arith.addf %45, %46 : vector<8x4xf32>
      %48 = arith.mulf %47, %43 : vector<8x4xf32>
      %cst_29 = arith.constant -0.0170881264 : f32
      %49 = vector.broadcast %cst_29 : f32 to vector<8x4xf32>
      %50 = arith.addf %48, %49 : vector<8x4xf32>
      %51 = arith.mulf %50, %43 : vector<8x4xf32>
      %cst_30 = arith.constant 0.0308918804 : f32
      %52 = vector.broadcast %cst_30 : f32 to vector<8x4xf32>
      %53 = arith.addf %51, %52 : vector<8x4xf32>
      %54 = arith.mulf %53, %43 : vector<8x4xf32>
      %cst_31 = arith.constant -0.0501743034 : f32
      %55 = vector.broadcast %cst_31 : f32 to vector<8x4xf32>
      %56 = arith.addf %54, %55 : vector<8x4xf32>
      %57 = arith.mulf %56, %43 : vector<8x4xf32>
      %cst_32 = arith.constant 0.0889789909 : f32
      %58 = vector.broadcast %cst_32 : f32 to vector<8x4xf32>
      %59 = arith.addf %57, %58 : vector<8x4xf32>
      %60 = arith.mulf %59, %43 : vector<8x4xf32>
      %cst_33 = arith.constant -0.214598805 : f32
      %61 = vector.broadcast %cst_33 : f32 to vector<8x4xf32>
      %62 = arith.addf %60, %61 : vector<8x4xf32>
      %63 = arith.mulf %62, %43 : vector<8x4xf32>
      %cst_34 = arith.constant 1.57079625 : f32
      %64 = vector.broadcast %cst_34 : f32 to vector<8x4xf32>
      %65 = arith.addf %63, %64 : vector<8x4xf32>
      %cst_35 = arith.constant 1.000000e+00 : f32
      %66 = vector.broadcast %cst_35 : f32 to vector<8x4xf32>
      %67 = arith.subf %66, %43 : vector<8x4xf32>
      %68 = math.sqrt %67 : vector<8x4xf32>
      %69 = arith.mulf %68, %65 : vector<8x4xf32>
      %cst_36 = arith.constant 0.636619746 : f32
      %70 = vector.broadcast %cst_36 : f32 to vector<8x4xf32>
      %71 = arith.mulf %70, %69 : vector<8x4xf32>
      %cst_37 = arith.constant 1.000000e+00 : f32
      %72 = vector.broadcast %cst_37 : f32 to vector<8x4xf32>
      %73 = arith.divf %72, %71 : vector<8x4xf32>
      %cst_38 = arith.constant dense<0xFF800000> : vector<4xf32>
      %74 = vector.multi_reduction <maximumf>, %73, %cst_38 [0] : vector<8x4xf32> to vector<4xf32>
      %75 = vector.shape_cast %74 : vector<4xf32> to vector<1x4xf32>
      %76 = vector.broadcast %75 : vector<1x4xf32> to vector<8x4xf32>
      %77 = arith.subf %73, %76 : vector<8x4xf32>
      %78 = math.exp %77 : vector<8x4xf32>
      %cst_39 = arith.constant dense<0.000000e+00> : vector<4xf32>
      %79 = vector.multi_reduction <add>, %78, %cst_39 [0] : vector<8x4xf32> to vector<4xf32>
      %80 = vector.shape_cast %79 : vector<4xf32> to vector<1x4xf32>
      %81 = vector.broadcast %80 : vector<1x4xf32> to vector<8x4xf32>
      %82 = arith.divf %78, %81 : vector<8x4xf32>
      %c0_40 = arith.constant 0 : index
      %c0_41 = arith.constant 0 : index
      %83 = vector.load %arg6[%c0_40, %c0_41] : memref<8x4xf32, #tpu.memory_space<vmem>>, vector<8x4xf32>
      tpu.vector_store %arg6[%c0_40, %c0_41], %82 {strides = array<i32>} : memref<8x4xf32, #tpu.memory_space<vmem>>, vector<8x4xf32>,
    } else {
    }
    %c0 = arith.constant 0 : index
    %c0_1 = arith.constant 0 : index
    %3 = vector.load %arg6[%c0, %c0_1] : memref<8x4xf32, #tpu.memory_space<vmem>>, vector<8x4xf32>
    %c0_2 = arith.constant 0 : index
    %c0_3 = arith.constant 0 : index
    %c0_4 = arith.constant 0 : index
    %c0_5 = arith.constant 0 : index
    %4 = vector.load %arg4[%c0_2, %c0_3, %c0_4, %c0_5] : memref<1x8x4x16xbf16, #tpu.memory_space<vmem>>, vector<1x8x4x16xbf16>
    %5 = vector.shape_cast %4 : vector<1x8x4x16xbf16> to vector<8x4x16xbf16>
    %6 = vector.shape_cast %3 : vector<8x4xf32> to vector<8x4x1xf32>
    %7 = arith.extf %5 : vector<8x4x16xbf16> to vector<8x4x16xf32>
    %8 = vector.broadcast %6 : vector<8x4x1xf32> to vector<8x4x16xf32>
    %9 = arith.mulf %8, %7 : vector<8x4x16xf32>
    %cst = arith.constant dense<0.000000e+00> : vector<4x16xf32>
    %10 = vector.multi_reduction <add>, %9, %cst [0] : vector<8x4x16xf32> to vector<4x16xf32>
    %cst_6 = arith.constant 1.250000e-01 : f32
    %11 = vector.broadcast %cst_6 : f32 to vector<4x16xf32>
    %12 = arith.mulf %10, %11 : vector<4x16xf32>
    %c0_7 = arith.constant 0 : index
    %c0_8 = arith.constant 0 : index
    %c0_9 = arith.constant 0 : index
    %13 = vector.load %arg5[%c0_7, %c0_8, %c0_9] : memref<1x4x16xf32, #tpu.memory_space<vmem>>, vector<1x4x16xf32>
    %14 = vector.shape_cast %13 : vector<1x4x16xf32> to vector<4x16xf32>
    %15 = vector.shape_cast %12 : vector<4x16xf32> to vector<1x4x16xf32>
    tpu.vector_store %arg5[%c0_7, %c0_8, %c0_9], %15 {strides = array<i32>} : memref<1x4x16xf32, #tpu.memory_space<vmem>>, vector<1x4x16xf32>,
    return
  }
  func.func @transform_0(%arg0: i32, %arg1: i32) -> (i32, i32, i32, i32) {
    %c0_i32 = arith.constant 0 : i32
    %c0_i32_0 = arith.constant 0 : i32
    %c0_i32_1 = arith.constant 0 : i32
    %c0_i32_2 = arith.constant 0 : i32
    return %arg0, %c0_i32, %c0_i32_0, %c0_i32_1 : i32, i32, i32, i32
  }
  func.func @transform_1(%arg0: i32, %arg1: i32) -> (i32, i32, i32) {
    %c0_i32 = arith.constant 0 : i32
    %c0_i32_0 = arith.constant 0 : i32
    %c0_i32_1 = arith.constant 0 : i32
    return %arg0, %c0_i32, %c0_i32_0 : i32, i32, i32
  }
  func.func @transform_2(%arg0: i32, %arg1: i32) -> (i32, i32, i32, i32) {
    %c0_i32 = arith.constant 0 : i32
    %c0_i32_0 = arith.constant 0 : i32
    %c0_i32_1 = arith.constant 0 : i32
    return %arg0, %c0_i32, %c0_i32_0, %arg1 : i32, i32, i32, i32
  }
  func.func @transform_3(%arg0: i32, %arg1: i32) -> (i32, i32, i32) {
    %c0_i32 = arith.constant 0 : i32
    %c0_i32_0 = arith.constant 0 : i32
    return %arg0, %c0_i32, %arg1 : i32, i32, i32
  }
}

</mosaic_0001>

<llo_original>
// kernel: custom-call.2
$region0: #{custom-call.2}
  %s0 = inlined_call_operand.vmem [shape: f32[8,2,2], index: 0, kind: input, shape index: {}]
  %s1 = inlined_call_operand.vmem [shape: f32[8,2,2], index: 1, kind: input, shape index: {}]
  %s2 = inlined_call_operand.vmem [shape: f32[8,2,2], index: 2, kind: input, shape index: {}]
  %s3 = inlined_call_operand.vmem [shape: f32[8,2,2], index: 3, kind: input, shape index: {}]
  %s4 = inlined_call_operand.vmem [shape: f32[8,2], index: 4, kind: output, shape index: {0}]
  %s5 = inlined_call_operand.vmem [shape: f32[8,2], index: 5, kind: output, shape index: {1}]
  %s6 = inlined_call_operand.vmem [shape: f32[8,2,2], index: 6, kind: output, shape index: {2}]
  %s7 = inlined_call_operand.vmem [shape: f32[8,2,2], index: 7, kind: output, shape index: {3}]
  %s8 = inlined_call_operand.vmem [shape: f32[8,2,2], index: 8, kind: output, shape index: {4}]
  %s9 = inlined_call_operand.vmem [shape: f32[8,2,2], index: 9, kind: output, shape index: {5}]
  %10 = xla_tuple %s4, %s5, %s6, %s7, %s8, %s9
  $region1: #{custom-call.2} parent=0
    #allocation0 [shape = 'u8[4096]{0}', space=vmem, size = 0x1000, scoped, tag = 'operand span for operand 0']
    #allocation1 [shape = 'u8[2048]{0}', space=vmem, size = 0x800, scoped, tag = 'packed  for operand 0']
    #allocation2 [shape = 'u8[4096]{0}', space=vmem, size = 0x1000, scoped, tag = 'operand span for operand 1']
    #allocation3 [shape = 'u8[2048]{0}', space=vmem, size = 0x800, scoped, tag = 'packed  for operand 1']
    #allocation4 [shape = 'u8[4096]{0}', space=vmem, size = 0x1000, scoped, tag = 'operand span for operand 2']
    #allocation5 [shape = 'u8[2048]{0}', space=vmem, size = 0x800, scoped, tag = 'packed  for operand 2']
    #allocation6 [shape = 'u8[4096]{0}', space=vmem, size = 0x1000, scoped, tag = 'operand span for operand 3']
    #allocation7 [shape = 'u8[2048]{0}', space=vmem, size = 0x800, scoped, tag = 'packed  for operand 3']
    #allocation8 [shape = 'u8[8192]{0}', space=vmem, size = 0x2000, scoped, tag = 'operand span for operand 4']
    #allocation9 [shape = 'u8[8192]{0}', space=vmem, size = 0x2000, scoped, tag = 'operand span for operand 5']
    #allocation10 [shape = 'u8[4096]{0}', space=vmem, size = 0x1000, scoped, tag = 'operand span for operand 6']
    #allocation11 [shape = 'u8[2048]{0}', space=vmem, size = 0x800, scoped, tag = 'packed  for operand 6']
    #allocation12 [shape = 'u8[4096]{0}', space=vmem, size = 0x1000, scoped, tag = 'operand span for operand 7']
    #allocation13 [shape = 'u8[2048]{0}', space=vmem, size = 0x800, scoped, tag = 'packed  for operand 7']
    #allocation14 [shape = 'u8[4096]{0}', space=vmem, size = 0x1000, scoped, tag = 'operand span for operand 8']
    #allocation15 [shape = 'u8[2048]{0}', space=vmem, size = 0x800, scoped, tag = 'packed  for operand 8']
    #allocation16 [shape = 'u8[4096]{0}', space=vmem, size = 0x1000, scoped, tag = 'operand span for operand 9']
    #allocation17 [shape = 'u8[2048]{0}', space=vmem, size = 0x800, scoped, tag = 'packed  for operand 9']
    loop: start=0, step=1, limit=10
    $region2: #{custom-call.2} parent=1 // loop_pre_header
      _
    $region3: #{custom-call.2} parent=1 // loop_header
      %s12 = sphi 0, %s16
      %p13 = scmp.ge.s32.totalorder %s12, 10
      %s24 = sphi 0, %s26
      %s27 = sphi 0, %s24
      %s28 = sphi 0, %s27
      %s44 = sphi 0, %s28
      %s52 = sphi 0, %s54
      %s55 = sphi 0, %s52
      %s56 = sphi 0, %s55
      %s72 = sphi 0, %s56
    $region4: #{custom-call.2} parent=1 // loop_header_branch
      %15 = sbr.rel (%p13) target = $region8
    $region5: #{custom-call.2} parent=1 // loop_body
      %s17 = ssub.s32 %s12, 1
      %s18 = ssub.s32 %s12, 2
      %s19 = sadd.s32 %s12, 1
      %s20 = sshrl.u32 %s12, 3
      %s21 = sshrl.u32 %s19, 3
      %s22 = ssub.s32 %s20, %s21
      %p23 = scmp.eq.s32.totalorder %s22, 0
      %s25 = sadd.s32 %s24, 1
      %s26 = scalar_select %p23, %s24, %s25
      %p29 = pneg %p23
      %p30 = scmp.eq.s32.totalorder %s12, 7
      %p31 = por %p29, %p30
      %p32 = scmp.ne.s32.totalorder %s24, %s27
      %p33 = scmp.eq.s32.totalorder %s12, 0
      %p34 = por %p32, %p33
      %p35 = scmp.ne.s32.totalorder %s24, %s27
      %p36 = scmp.eq.s32.totalorder %s17, 7
      %p37 = por %p35, %p36
      %p38 = scmp.ne.s32.totalorder %s27, %s28
      %p39 = scmp.eq.s32.totalorder %s17, 0
      %p40 = por %p38, %p39
      %p41 = scmp.ne.s32.totalorder %s27, %s28
      %p42 = scmp.eq.s32.totalorder %s18, 7
      %p43 = por %p41, %p42
      %p45 = scmp.ne.s32.totalorder %s28, %s44
      %p46 = scmp.eq.s32.totalorder %s18, 0
      %p47 = por %p45, %p46
      %s48 = sshrl.u32 %s12, 3
      %s49 = sshrl.u32 %s19, 3
      %s50 = ssub.s32 %s48, %s49
      %p51 = scmp.eq.s32.totalorder %s50, 0
      %s53 = sadd.s32 %s52, 1
      %s54 = scalar_select %p51, %s52, %s53
      %p57 = pneg %p51
      %p58 = scmp.eq.s32.totalorder %s12, 7
      %p59 = por %p57, %p58
      %p60 = scmp.ne.s32.totalorder %s52, %s55
      %p61 = scmp.eq.s32.totalorder %s12, 0
      %p62 = por %p60, %p61
      %p63 = scmp.ne.s32.totalorder %s52, %s55
      %p64 = scmp.eq.s32.totalorder %s17, 7
      %p65 = por %p63, %p64
      %p66 = scmp.ne.s32.totalorder %s55, %s56
      %p67 = scmp.eq.s32.totalorder %s17, 0
      %p68 = por %p66, %p67
      %p69 = scmp.ne.s32.totalorder %s55, %s56
      %p70 = scmp.eq.s32.totalorder %s18, 7
      %p71 = por %p69, %p70
      %p73 = scmp.ne.s32.totalorder %s56, %s72
      %p74 = scmp.eq.s32.totalorder %s18, 0
      %p75 = por %p73, %p74
      %p76 = scmp.le.s32.totalorder 1, %s12
      %p77 = scmp.lt.s32.totalorder %s12, 9
      %p78 = pnand %p76, %p77
      %p79 = pneg %p78
      // Predicated region
      $region9: #{custom-call.2} parent=5 // pred_check
        _
      $region10: #{custom-call.2} parent=5 // pred_check_branch
        %81 = sbr.rel (%p78) target = $region12
      $region11: #{custom-call.2} parent=5 // pred_region
        %s82 = ssub.s32 %s12, 1
      $region12: #{custom-call.2} parent=5 // pred_fallthru
        _
      %p83 = scmp.lt.s32.totalorder %s12, 8
      // Predicated region
      $region13: #{custom-call.2} parent=5 // pred_check
        %p84 = pneg %p83
      $region14: #{custom-call.2} parent=5 // pred_check_branch
        %86 = sbr.rel (%p84) target = $region16
      $region15: #{custom-call.2} parent=5 // pred_region
        %s87 = sand.u32 %s12, 1
        %s88 = sand.u32 %s12, 1
        %s89 = smul.addr %s88, 2
        %s90 = scalar_lea.vmem [#allocation1], %s89
        %s91 = smul.addr %s12, 2
        %s92 = scalar_lea.vmem %s0, %s91
        // Predicated region
        $region17: #{custom-call.2} parent=15 // pred_check
          _
        $region18: #{custom-call.2} parent=15 // pred_check_branch
          %94 = sbr.rel (0) target = $region20
        $region19: #{custom-call.2} parent=15 // pred_region
          // Predicated region
          $region21: #{custom-call.2} parent=19 // pred_check
            _
          $region22: #{custom-call.2} parent=19 // pred_check_branch
            %96 = sbr.rel target = $region24
          $region23: #{custom-call.2} parent=19 // pred_region
            // Predicated region
            $region36: #{custom-call.2} parent=23 // pred_check
              _
            $region37: #{custom-call.2} parent=23 // pred_check_branch
              %112 = sbr.rel (0) target = $region39
            $region38: #{custom-call.2} parent=23 // pred_region
              %s114 = ssub.s32 4, 1
              loop: start=0, step=1, limit=1
              $region40: #{custom-call.2} parent=38 // loop_pre_header
                _
              $region41: #{custom-call.2} parent=38 // loop_header
                %s116 = sphi 0, %s120
                %p117 = scmp.ge.s32.totalorder %s116, 1
                %s121 = sphi %s92, %s92
                %s122 = sphi %s90, %s90
              $region42: #{custom-call.2} parent=38 // loop_header_branch
                %119 = sbr.rel (%p117) target = $region46
              $region43: #{custom-call.2} parent=38 // loop_body
                %v123 = vld [vmem:[%s121] sm:%s114]
                %124 = vst [vmem:[%s122] sm:%s114] %v123
              $region44: #{custom-call.2} parent=38 // loop_footer
                %s120 = sadd.s32 1, %s116
              $region45: #{custom-call.2} parent=38 // loop_footer_branch
                %115 = sbr.rel target = $region41
              $region46: #{custom-call.2} parent=38 // loop_exit
                _
            $region39: #{custom-call.2} parent=23 // pred_fallthru
              _
          $region24: #{custom-call.2} parent=19 // pred_fallthru
            _
          // Predicated region
          $region25: #{custom-call.2} parent=19 // pred_check
            _
          $region26: #{custom-call.2} parent=19 // pred_check_branch
            %98 = sbr.rel (0) target = $region28
          $region27: #{custom-call.2} parent=19 // pred_region
            %s100 = ssub.s32 4, 1
            loop: start=0, step=1, limit=1
            $region29: #{custom-call.2} parent=27 // loop_pre_header
              _
            $region30: #{custom-call.2} parent=27 // loop_header
              %s102 = sphi 0, %s106
              %p103 = scmp.ge.s32.totalorder %s102, 1
              %s107 = sphi %s92, %s92
              %s108 = sphi %s90, %s90
            $region31: #{custom-call.2} parent=27 // loop_header_branch
              %105 = sbr.rel (%p103) target = $region35
            $region32: #{custom-call.2} parent=27 // loop_body
              %v109 = vld [vmem:[%s107] sm:%s100]
              %110 = vst [vmem:[%s108] sm:%s100] %v109
            $region33: #{custom-call.2} parent=27 // loop_footer
              %s106 = sadd.s32 1, %s102
            $region34: #{custom-call.2} parent=27 // loop_footer_branch
              %101 = sbr.rel target = $region30
            $region35: #{custom-call.2} parent=27 // loop_exit
              _
          $region28: #{custom-call.2} parent=19 // pred_fallthru
            _
        $region20: #{custom-call.2} parent=15 // pred_fallthru
          _
        %125 = vnop
        %s126 = sand.u32 %s12, 1
        %s127 = sand.u32 %s12, 1
        %s128 = smul.addr %s127, 2
        %s129 = scalar_lea.vmem [#allocation3], %s128
        %s130 = smul.addr %s12, 2
        %s131 = scalar_lea.vmem %s1, %s130
        // Predicated region
        $region47: #{custom-call.2} parent=15 // pred_check
          _
        $region48: #{custom-call.2} parent=15 // pred_check_branch
          %133 = sbr.rel (0) target = $region50
        $region49: #{custom-call.2} parent=15 // pred_region
          // Predicated region
          $region51: #{custom-call.2} parent=49 // pred_check
            _
          $region52: #{custom-call.2} parent=49 // pred_check_branch
            %135 = sbr.rel target = $region54
          $region53: #{custom-call.2} parent=49 // pred_region
            // Predicated region
            $region66: #{custom-call.2} parent=53 // pred_check
              _
            $region67: #{custom-call.2} parent=53 // pred_check_branch
              %151 = sbr.rel (0) target = $region69
            $region68: #{custom-call.2} parent=53 // pred_region
              %s153 = ssub.s32 4, 1
              loop: start=0, step=1, limit=1
              $region70: #{custom-call.2} parent=68 // loop_pre_header
                _
              $region71: #{custom-call.2} parent=68 // loop_header
                %s155 = sphi 0, %s159
                %p156 = scmp.ge.s32.totalorder %s155, 1
                %s160 = sphi %s131, %s131
                %s161 = sphi %s129, %s129
              $region72: #{custom-call.2} parent=68 // loop_header_branch
                %158 = sbr.rel (%p156) target = $region76
              $region73: #{custom-call.2} parent=68 // loop_body
                %v162 = vld [vmem:[%s160] sm:%s153]
                %163 = vst [vmem:[%s161] sm:%s153] %v162
              $region74: #{custom-call.2} parent=68 // loop_footer
                %s159 = sadd.s32 1, %s155
              $region75: #{custom-call.2} parent=68 // loop_footer_branch
                %154 = sbr.rel target = $region71
              $region76: #{custom-call.2} parent=68 // loop_exit
                _
            $region69: #{custom-call.2} parent=53 // pred_fallthru
              _
          $region54: #{custom-call.2} parent=49 // pred_fallthru
            _
          // Predicated region
          $region55: #{custom-call.2} parent=49 // pred_check
            _
          $region56: #{custom-call.2} parent=49 // pred_check_branch
            %137 = sbr.rel (0) target = $region58
          $region57: #{custom-call.2} parent=49 // pred_region
            %s139 = ssub.s32 4, 1
            loop: start=0, step=1, limit=1
            $region59: #{custom-call.2} parent=57 // loop_pre_header
              _
            $region60: #{custom-call.2} parent=57 // loop_header
              %s141 = sphi 0, %s145
              %p142 = scmp.ge.s32.totalorder %s141, 1
              %s146 = sphi %s131, %s131
              %s147 = sphi %s129, %s129
            $region61: #{custom-call.2} parent=57 // loop_header_branch
              %144 = sbr.rel (%p142) target = $region65
            $region62: #{custom-call.2} parent=57 // loop_body
              %v148 = vld [vmem:[%s146] sm:%s139]
              %149 = vst [vmem:[%s147] sm:%s139] %v148
            $region63: #{custom-call.2} parent=57 // loop_footer
              %s145 = sadd.s32 1, %s141
            $region64: #{custom-call.2} parent=57 // loop_footer_branch
              %140 = sbr.rel target = $region60
            $region65: #{custom-call.2} parent=57 // loop_exit
              _
          $region58: #{custom-call.2} parent=49 // pred_fallthru
            _
        $region50: #{custom-call.2} parent=15 // pred_fallthru
          _
        %164 = vnop
        %s165 = sand.u32 %s12, 1
        %s166 = sand.u32 %s12, 1
        %s167 = smul.addr %s166, 2
        %s168 = scalar_lea.vmem [#allocation5], %s167
        %s169 = smul.addr %s12, 2
        %s170 = scalar_lea.vmem %s2, %s169
        // Predicated region
        $region77: #{custom-call.2} parent=15 // pred_check
          _
        $region78: #{custom-call.2} parent=15 // pred_check_branch
          %172 = sbr.rel (0) target = $region80
        $region79: #{custom-call.2} parent=15 // pred_region
          // Predicated region
          $region81: #{custom-call.2} parent=79 // pred_check
            _
          $region82: #{custom-call.2} parent=79 // pred_check_branch
            %174 = sbr.rel target = $region84
          $region83: #{custom-call.2} parent=79 // pred_region
            // Predicated region
            $region96: #{custom-call.2} parent=83 // pred_check
              _
            $region97: #{custom-call.2} parent=83 // pred_check_branch
              %190 = sbr.rel (0) target = $region99
            $region98: #{custom-call.2} parent=83 // pred_region
              %s192 = ssub.s32 4, 1
              loop: start=0, step=1, limit=1
              $region100: #{custom-call.2} parent=98 // loop_pre_header
                _
              $region101: #{custom-call.2} parent=98 // loop_header
                %s194 = sphi 0, %s198
                %p195 = scmp.ge.s32.totalorder %s194, 1
                %s199 = sphi %s170, %s170
                %s200 = sphi %s168, %s168
              $region102: #{custom-call.2} parent=98 // loop_header_branch
                %197 = sbr.rel (%p195) target = $region106
              $region103: #{custom-call.2} parent=98 // loop_body
                %v201 = vld [vmem:[%s199] sm:%s192]
                %202 = vst [vmem:[%s200] sm:%s192] %v201
              $region104: #{custom-call.2} parent=98 // loop_footer
                %s198 = sadd.s32 1, %s194
              $region105: #{custom-call.2} parent=98 // loop_footer_branch
                %193 = sbr.rel target = $region101
              $region106: #{custom-call.2} parent=98 // loop_exit
                _
            $region99: #{custom-call.2} parent=83 // pred_fallthru
              _
          $region84: #{custom-call.2} parent=79 // pred_fallthru
            _
          // Predicated region
          $region85: #{custom-call.2} parent=79 // pred_check
            _
          $region86: #{custom-call.2} parent=79 // pred_check_branch
            %176 = sbr.rel (0) target = $region88
          $region87: #{custom-call.2} parent=79 // pred_region
            %s178 = ssub.s32 4, 1
            loop: start=0, step=1, limit=1
            $region89: #{custom-call.2} parent=87 // loop_pre_header
              _
            $region90: #{custom-call.2} parent=87 // loop_header
              %s180 = sphi 0, %s184
              %p181 = scmp.ge.s32.totalorder %s180, 1
              %s185 = sphi %s170, %s170
              %s186 = sphi %s168, %s168
            $region91: #{custom-call.2} parent=87 // loop_header_branch
              %183 = sbr.rel (%p181) target = $region95
            $region92: #{custom-call.2} parent=87 // loop_body
              %v187 = vld [vmem:[%s185] sm:%s178]
              %188 = vst [vmem:[%s186] sm:%s178] %v187
            $region93: #{custom-call.2} parent=87 // loop_footer
              %s184 = sadd.s32 1, %s180
            $region94: #{custom-call.2} parent=87 // loop_footer_branch
              %179 = sbr.rel target = $region90
            $region95: #{custom-call.2} parent=87 // loop_exit
              _
          $region88: #{custom-call.2} parent=79 // pred_fallthru
            _
        $region80: #{custom-call.2} parent=15 // pred_fallthru
          _
        %203 = vnop
        %s204 = sand.u32 %s12, 1
        %s205 = sand.u32 %s12, 1
        %s206 = smul.addr %s205, 2
        %s207 = scalar_lea.vmem [#allocation7], %s206
        %s208 = smul.addr %s12, 2
        %s209 = scalar_lea.vmem %s3, %s208
        // Predicated region
        $region107: #{custom-call.2} parent=15 // pred_check
          _
        $region108: #{custom-call.2} parent=15 // pred_check_branch
          %211 = sbr.rel (0) target = $region110
        $region109: #{custom-call.2} parent=15 // pred_region
          // Predicated region
          $region111: #{custom-call.2} parent=109 // pred_check
            _
          $region112: #{custom-call.2} parent=109 // pred_check_branch
            %213 = sbr.rel target = $region114
          $region113: #{custom-call.2} parent=109 // pred_region
            // Predicated region
            $region126: #{custom-call.2} parent=113 // pred_check
              _
            $region127: #{custom-call.2} parent=113 // pred_check_branch
              %229 = sbr.rel (0) target = $region129
            $region128: #{custom-call.2} parent=113 // pred_region
              %s231 = ssub.s32 4, 1
              loop: start=0, step=1, limit=1
              $region130: #{custom-call.2} parent=128 // loop_pre_header
                _
              $region131: #{custom-call.2} parent=128 // loop_header
                %s233 = sphi 0, %s237
                %p234 = scmp.ge.s32.totalorder %s233, 1
                %s238 = sphi %s209, %s209
                %s239 = sphi %s207, %s207
              $region132: #{custom-call.2} parent=128 // loop_header_branch
                %236 = sbr.rel (%p234) target = $region136
              $region133: #{custom-call.2} parent=128 // loop_body
                %v240 = vld [vmem:[%s238] sm:%s231]
                %241 = vst [vmem:[%s239] sm:%s231] %v240
              $region134: #{custom-call.2} parent=128 // loop_footer
                %s237 = sadd.s32 1, %s233
              $region135: #{custom-call.2} parent=128 // loop_footer_branch
                %232 = sbr.rel target = $region131
              $region136: #{custom-call.2} parent=128 // loop_exit
                _
            $region129: #{custom-call.2} parent=113 // pred_fallthru
              _
          $region114: #{custom-call.2} parent=109 // pred_fallthru
            _
          // Predicated region
          $region115: #{custom-call.2} parent=109 // pred_check
            _
          $region116: #{custom-call.2} parent=109 // pred_check_branch
            %215 = sbr.rel (0) target = $region118
          $region117: #{custom-call.2} parent=109 // pred_region
            %s217 = ssub.s32 4, 1
            loop: start=0, step=1, limit=1
            $region119: #{custom-call.2} parent=117 // loop_pre_header
              _
            $region120: #{custom-call.2} parent=117 // loop_header
              %s219 = sphi 0, %s223
              %p220 = scmp.ge.s32.totalorder %s219, 1
              %s224 = sphi %s209, %s209
              %s225 = sphi %s207, %s207
            $region121: #{custom-call.2} parent=117 // loop_header_branch
              %222 = sbr.rel (%p220) target = $region125
            $region122: #{custom-call.2} parent=117 // loop_body
              %v226 = vld [vmem:[%s224] sm:%s217]
              %227 = vst [vmem:[%s225] sm:%s217] %v226
            $region123: #{custom-call.2} parent=117 // loop_footer
              %s223 = sadd.s32 1, %s219
            $region124: #{custom-call.2} parent=117 // loop_footer_branch
              %218 = sbr.rel target = $region120
            $region125: #{custom-call.2} parent=117 // loop_exit
              _
          $region118: #{custom-call.2} parent=109 // pred_fallthru
            _
        $region110: #{custom-call.2} parent=15 // pred_fallthru
          _
        %242 = vnop
      $region16: #{custom-call.2} parent=5 // pred_fallthru
        _
      %p243 = scmp.le.s32.totalorder 1, %s12
      %p244 = scmp.lt.s32.totalorder %s12, 9
      %p245 = pnand %p243, %p244
      %p246 = pneg %p245
      // Predicated region
      $region137: #{custom-call.2} parent=5 // pred_check
        _
      $region138: #{custom-call.2} parent=5 // pred_check_branch
        %248 = sbr.rel (%p245) target = $region140
      $region139: #{custom-call.2} parent=5 // pred_region
        #allocation18 [shape = 'f32[2,2]{1,0}', space=vmem, size = 0x1000, scoped, tag = 'a top-left matrix']
        #allocation19 [shape = 'f32[2,2]{1,0}', space=vmem, size = 0x1000, scoped, tag = 'a top-right matrix']
        #allocation20 [shape = 'f32[2,2]{1,0}', space=vmem, size = 0x1000, scoped, tag = 'a bottom-left matrix']
        #allocation21 [shape = 'f32[2,2]{1,0}', space=vmem, size = 0x1000, scoped, tag = 'a bottom-right matrix']
        %s249 = ssub.s32 %s12, 1
        %s250 = sand.u32 %s17, 1
        %s251 = sand.u32 %s17, 1
        %s252 = smul.addr %s251, 2
        %s253 = scalar_lea.vmem [#allocation1], %s252
        %s254 = sand.u32 %s17, 1
        %s255 = sand.u32 %s17, 1
        %s256 = smul.addr %s255, 2
        %s257 = scalar_lea.vmem [#allocation3], %s256
        %s258 = sand.u32 %s17, 1
        %s259 = sand.u32 %s17, 1
        %s260 = smul.addr %s259, 2
        %s261 = scalar_lea.vmem [#allocation5], %s260
        %s262 = sand.u32 %s17, 1
        %s263 = sand.u32 %s17, 1
        %s264 = smul.addr %s263, 2
        %s265 = scalar_lea.vmem [#allocation7], %s264
        %s266 = sand.u32 %s17, 1
        %s267 = sand.u32 %s17, 1
        %s268 = smul.addr %s267, 2
        %s269 = scalar_lea.vmem [#allocation1], %s268
        %s270 = sand.u32 %s17, 1
        %s271 = sand.u32 %s17, 1
        %s272 = smul.addr %s271, 2
        %s273 = scalar_lea.vmem [#allocation3], %s272
        %s274 = sand.u32 %s17, 1
        %s275 = sand.u32 %s17, 1
        %s276 = smul.addr %s275, 2
        %s277 = scalar_lea.vmem [#allocation5], %s276
        %s278 = sand.u32 %s17, 1
        %s279 = sand.u32 %s17, 1
        %s280 = smul.addr %s279, 2
        %s281 = scalar_lea.vmem [#allocation7], %s280
        %p282 = pneg %p40
        %p283 = pneg %p37
        %s284 = sand.u32 %s27, 1
        %s285 = sand.u32 %s27, 1
        %s286 = smul.addr %s285, 8
        %s287 = scalar_lea.vmem [#allocation8], %s286
        %p288 = pneg %p68
        %p289 = pneg %p65
        %s290 = sand.u32 %s55, 1
        %s291 = sand.u32 %s55, 1
        %s292 = smul.addr %s291, 8
        %s293 = scalar_lea.vmem [#allocation9], %s292
        %s294 = sand.u32 %s17, 1
        %s295 = sand.u32 %s17, 1
        %s296 = smul.addr %s295, 2
        %s297 = scalar_lea.vmem [#allocation11], %s296
        %s298 = sand.u32 %s17, 1
        %s299 = sand.u32 %s17, 1
        %s300 = smul.addr %s299, 2
        %s301 = scalar_lea.vmem [#allocation13], %s300
        %s302 = sand.u32 %s17, 1
        %s303 = sand.u32 %s17, 1
        %s304 = smul.addr %s303, 2
        %s305 = scalar_lea.vmem [#allocation15], %s304
        %s306 = sand.u32 %s17, 1
        %s307 = sand.u32 %s17, 1
        %s308 = smul.addr %s307, 2
        %s309 = scalar_lea.vmem [#allocation17], %s308
        %s311 = ssub.s32 4, 1
        %v312 = vld [vmem:[%s269] sm:%s311]
        %313 = vst [vmem:[#allocation0] sm:%s311] %v312
        %s315 = ssub.s32 4, 1
        %v316 = vld [vmem:[%s273] sm:%s315]
        %317 = vst [vmem:[#allocation2] sm:%s315] %v316
        %s319 = ssub.s32 4, 1
        %v320 = vld [vmem:[%s277] sm:%s319]
        %321 = vst [vmem:[#allocation4] sm:%s319] %v320
        %s323 = ssub.s32 4, 1
        %v324 = vld [vmem:[%s281] sm:%s323]
        %325 = vst [vmem:[#allocation6] sm:%s323] %v324
        %s326 = sshrl.u32 %s17, 3
        %s327 = sshrl.u32 %s17, 3
        %s328 = smov [#allocation18]
        %v329 = vld [vmem:[#allocation0] sm:$0xff]
        %330 = vst [vmem:[%s328] sm:$0xff] %v329
        %s331 = smov [#allocation19]
        %v332 = vld [vmem:[#allocation2] sm:$0xff]
        %333 = vst [vmem:[%s331] sm:$0xff] %v332
        %s334 = smov [#allocation20]
        %v335 = vld [vmem:[#allocation4] sm:$0xff]
        %336 = vst [vmem:[%s334] sm:$0xff] %v335
        %s337 = smov [#allocation21]
        %v338 = vld [vmem:[#allocation6] sm:$0xff]
        %339 = vst [vmem:[%s337] sm:$0xff] %v338
        %340 = vst [vmem:[#allocation10] sm:$0xff] 0.0
        %341 = vst [vmem:[#allocation12] sm:$0xff] 0.0
        %342 = vst [vmem:[#allocation14] sm:$0xff] 0.0
        %343 = vst [vmem:[#allocation16] sm:$0xff] 0.0
        %s344 = smov [#allocation10]
        %v345 = vlaneseq
        %v346 = vand.u32 %v345, 127
        %v347 = vmov %v346
        %v348 = vlaneseq
        %v349 = vshrl.u32 %v348, 7
        %v350 = vmov %v349
        %v351 = vld [vmem:[%s344] sm:$0x3]
        %vm354 = vcmp.eq.s32.totalorder %v350, %v347
        %v355 = vsel %vm354, 1.0, %v351
        %356 = vst [vmem:[%s344] sm:$0x3] %v355
        %s357 = smov [#allocation16]
        %v358 = vlaneseq
        %v359 = vand.u32 %v358, 127
        %v360 = vmov %v359
        %v361 = vlaneseq
        %v362 = vshrl.u32 %v361, 7
        %v363 = vmov %v362
        %v364 = vld [vmem:[%s357] sm:$0x3]
        %vm367 = vcmp.eq.s32.totalorder %v363, %v360
        %v368 = vsel %vm367, 1.0, %v364
        %369 = vst [vmem:[%s357] sm:$0x3] %v368
        // While loop
        $region141: #{custom-call.2} parent=139 // loop_pre_header
          _
        $region142: #{custom-call.2} parent=139 // loop_header
          %s371 = sphi 0, %s953
          %v372 = vlaneseq
          %v373 = vand.u32 %v372, 127
          %v374 = vmov %v373
          %v375 = vlaneseq
          %v376 = vshrl.u32 %v375, 7
          %v377 = vmov %v376
          %s378 = smov [#allocation18]
          %v379 = vlaneseq
          %v380 = vand.u32 %v379, 127
          %vm381 = vcmp.ge.s32.totalorder %v380, 0
          %vm382 = vcmp.lt.s32.totalorder %v380, 2
          %vm383 = vmand %vm381, %vm382
          %v384 = vld [vmem:[%s378] sm:$0x3]
          %v385 = vsel %vm383, %v384, 0.0
          %v386 = vmul.f32 %v385, %v385
          %vm389 = vcmp.eq.s32.totalorder %v377, %v374
          %v390 = vsel %vm389, 0.0, %v386
          %v391 = vlaneseq
          %v392 = vand.u32 %v391, 127
          %v393 = vmov %v392
          %v394 = vlaneseq
          %v395 = vshrl.u32 %v394, 7
          %v396 = vmov %v395
          %s397 = smov [#allocation19]
          %v398 = vlaneseq
          %v399 = vand.u32 %v398, 127
          %vm400 = vcmp.ge.s32.totalorder %v399, 0
          %vm401 = vcmp.lt.s32.totalorder %v399, 2
          %vm402 = vmand %vm400, %vm401
          %v403 = vld [vmem:[%s397] sm:$0x3]
          %v404 = vsel %vm402, %v403, 0.0
          %v405 = vmul.f32 %v404, %v404
          %v406 = vadd.f32 %v390, %v405
          %v407 = vadd.f32 %v386, %v405
          %v408 = vlaneseq
          %v409 = vand.u32 %v408, 127
          %v410 = vmov %v409
          %v411 = vlaneseq
          %v412 = vshrl.u32 %v411, 7
          %v413 = vmov %v412
          %s414 = smov [#allocation20]
          %v415 = vlaneseq
          %v416 = vand.u32 %v415, 127
          %vm417 = vcmp.ge.s32.totalorder %v416, 0
          %vm418 = vcmp.lt.s32.totalorder %v416, 2
          %vm419 = vmand %vm417, %vm418
          %v420 = vld [vmem:[%s414] sm:$0x3]
          %v421 = vsel %vm419, %v420, 0.0
          %v422 = vmul.f32 %v421, %v421
          %v423 = vadd.f32 %v406, %v422
          %v424 = vadd.f32 %v407, %v422
          %v425 = vlaneseq
          %v426 = vand.u32 %v425, 127
          %v427 = vmov %v426
          %v428 = vlaneseq
          %v429 = vshrl.u32 %v428, 7
          %v430 = vmov %v429
          %s431 = smov [#allocation21]
          %v432 = vlaneseq
          %v433 = vand.u32 %v432, 127
          %vm434 = vcmp.ge.s32.totalorder %v433, 0
          %vm435 = vcmp.lt.s32.totalorder %v433, 2
          %vm436 = vmand %vm434, %vm435
          %v437 = vld [vmem:[%s431] sm:$0x3]
          %v438 = vsel %vm436, %v437, 0.0
          %v439 = vmul.f32 %v438, %v438
          %vm442 = vcmp.eq.s32.totalorder %v430, %v427
          %v443 = vsel %vm442, 0.0, %v439
          %v444 = vadd.f32 %v423, %v443
          %v445 = vadd.f32 %v424, %v439
          %446 = vadd.xlane.f32.xlu0 %v445
          %v447 = vpop.xlane.xlu0 %446
          %v448 = vrot.slane %v447, 4
          %v449 = vadd.f32 %v447, %v448
          %v450 = vrot.slane %v449, 2
          %v451 = vadd.f32 %v449, %v450
          %v452 = vrot.slane %v451, 1
          %v453 = vadd.f32 %v451, %v452
          %454 = vadd.xlane.f32.xlu0 %v444
          %v455 = vpop.xlane.xlu0 %454
          %v456 = vrot.slane %v455, 4
          %v457 = vadd.f32 %v455, %v456
          %v458 = vrot.slane %v457, 2
          %v459 = vadd.f32 %v457, %v458
          %v460 = vrot.slane %v459, 1
          %v461 = vadd.f32 %v459, %v460
          %s462 = vtos %v461
          %s463 = vtos %v453
          %s464 = smul.f32 1e-10, %s463
          %p465 = scmp.le.f32.partialorder %s462, %s464
          %p466 = scmp.ge.s32.totalorder %s371, 15
          %p467 = por %p465, %p466
        $region143: #{custom-call.2} parent=139 // loop_header_branch
          %955 = sbr.rel (%p467) target = $region147
        $region144: #{custom-call.2} parent=139 // loop_body
          loop: start=0, step=1, limit=3
          $region148: #{custom-call.2} parent=144 // loop_pre_header
            _
          $region149: #{custom-call.2} parent=144 // loop_header
            %s469 = sphi 0, %s473
            %p470 = scmp.ge.s32.totalorder %s469, 3
          $region150: #{custom-call.2} parent=144 // loop_header_branch
            %472 = sbr.rel (%p470) target = $region154
          $region151: #{custom-call.2} parent=144 // loop_body
            #allocation22 [shape = 'f32[1024]{0}', space=vmem, size = 0x1000, scoped, tag = 'a_tl_diag vmem']
            #allocation23 [shape = 'f32[1024]{0}', space=vmem, size = 0x1000, scoped, tag = 'a_tr_diag vmem']
            #allocation24 [shape = 'f32[1024]{0}', space=vmem, size = 0x1000, scoped, tag = 'a_br_diag vmem']
            #allocation25 [shape = 'f32[1024]{0}', space=vmem, size = 0x1000, scoped, tag = 'rt1 vmem']
            #allocation26 [shape = 'f32[1024]{0}', space=vmem, size = 0x1000, scoped, tag = 'rt2 vmem']
            #allocation27 [shape = 'f32[1024]{0}', space=vmem, size = 0x1000, scoped, tag = 'c vmem']
            #allocation28 [shape = 'f32[1024]{0}', space=vmem, size = 0x1000, scoped, tag = 's vmem']
            #allocation29 [shape = 'f32[4096]{0}', space=vmem, size = 0x4000, scoped, tag = 'c broadcast']
            #allocation30 [shape = 'f32[4096]{0}', space=vmem, size = 0x4000, scoped, tag = 's broadcast']
            %s474 = smov [#allocation18]
            %s475 = smov [#allocation22]
            %v476 = vlaneseq
            %v477 = vand.u32 %v476, 127
            %v478 = vmov %v477
            %v479 = vlaneseq
            %v480 = vshrl.u32 %v479, 7
            %v481 = vmov %v480
            %v482 = vld [vmem:[%s474] sm:$0x3]
            %vm485 = vcmp.eq.s32.totalorder %v481, %v478
            %v486 = vsel %vm485, %v482, 0.0
            %v487 = vrot.slane %v486, 4
            %v488 = vadd.f32 %v486, %v487
            %v489 = vrot.slane %v488, 2
            %v490 = vadd.f32 %v488, %v489
            %v491 = vrot.slane %v490, 1
            %v492 = vadd.f32 %v490, %v491
            %493 = vst [vmem:[%s475] sm:$0x1] %v492
            %s494 = smov [#allocation19]
            %s495 = smov [#allocation23]
            %v496 = vlaneseq
            %v497 = vand.u32 %v496, 127
            %v498 = vmov %v497
            %v499 = vlaneseq
            %v500 = vshrl.u32 %v499, 7
            %v501 = vmov %v500
            %v502 = vld [vmem:[%s494] sm:$0x3]
            %vm505 = vcmp.eq.s32.totalorder %v501, %v498
            %v506 = vsel %vm505, %v502, 0.0
            %v507 = vrot.slane %v506, 4
            %v508 = vadd.f32 %v506, %v507
            %v509 = vrot.slane %v508, 2
            %v510 = vadd.f32 %v508, %v509
            %v511 = vrot.slane %v510, 1
            %v512 = vadd.f32 %v510, %v511
            %513 = vst [vmem:[%s495] sm:$0x1] %v512
            %s514 = smov [#allocation21]
            %s515 = smov [#allocation24]
            %v516 = vlaneseq
            %v517 = vand.u32 %v516, 127
            %v518 = vmov %v517
            %v519 = vlaneseq
            %v520 = vshrl.u32 %v519, 7
            %v521 = vmov %v520
            %v522 = vld [vmem:[%s514] sm:$0x3]
            %vm525 = vcmp.eq.s32.totalorder %v521, %v518
            %v526 = vsel %vm525, %v522, 0.0
            %v527 = vrot.slane %v526, 4
            %v528 = vadd.f32 %v526, %v527
            %v529 = vrot.slane %v528, 2
            %v530 = vadd.f32 %v528, %v529
            %v531 = vrot.slane %v530, 1
            %v532 = vadd.f32 %v530, %v531
            %533 = vst [vmem:[%s515] sm:$0x1] %v532
            %s534 = smov [#allocation27]
            %s535 = smov [#allocation28]
            %s536 = smov [#allocation22]
            %v537 = vld [vmem:[%s536] sm:$0xff]
            %s538 = smov [#allocation23]
            %v539 = vld [vmem:[%s538] sm:$0xff]
            %s540 = smov [#allocation24]
            %v541 = vld [vmem:[%s540] sm:$0xff]
            %v542 = vsub.f32 %v541, %v537
            %v543 = vmul.f32 2.0, %v539
            %v544 = vrcp.pop %v543
            %v545 = vmul.f32 %v543, %v544
            %v546 = vsub.f32 1.0, %v545
            %v547 = vmul.f32 %v544, %v546
            %v548 = vadd.f32 %v544, %v547
            %vm549 = vweird.f32 %v543
            %vm550 = vweird.f32 %v544
            %vm551 = vmor %vm549, %vm550
            %v552 = vsel %vm551, %v544, %v548
            %v553 = vand.u32 2147483647, %v543
            %vm554 = vcmp.eq.f32.partialorder %v553, 8.507059e+37
            %v555 = vand.u32 %v543, 2147483648
            %v556 = vor.u32 1.1754944e-38, %v555
            %v557 = vsel %vm554, %v556, %v552
            %v558 = vmul.f32 %v542, %v557
            %vm559 = vcmp.ge.f32.partialorder %v558, 0.0
            %v560 = vmul.f32 %v558, %v558
            %v561 = vadd.f32 1.0, %v560
            %v562 = vrsqrt.pop %v561
            %v563 = vmul.f32 %v562, %v561
            %v564 = vmul.f32 %v563, %v562
            %v565 = vmul.f32 0.5, %v564
            %v566 = vsub.f32 1.5, %v565
            %v567 = vmul.f32 %v562, %v566
            %v568 = vmul.f32 %v561, %v567
            %vm569 = vcmp.eq.f32.partialorder %v561, inf
            %v570 = vsel %vm569, %v561, %v568
            %vm571 = vcmp.eq.f32.partialorder %v561, 0.0
            %v572 = vand.u32 %v561, 2147483648
            %v573 = vsel %vm571, %v572, %v570
            %v574 = vxor.u32 %v573, 2147483648
            %v575 = vsel %vm559, %v573, %v574
            %v576 = vadd.f32 %v558, %v575
            %v577 = vrcp.pop %v576
            %v578 = vmul.f32 %v576, %v577
            %v579 = vsub.f32 1.0, %v578
            %v580 = vmul.f32 %v577, %v579
            %v581 = vadd.f32 %v577, %v580
            %vm582 = vweird.f32 %v576
            %vm583 = vweird.f32 %v577
            %vm584 = vmor %vm582, %vm583
            %v585 = vsel %vm584, %v577, %v581
            %v586 = vand.u32 2147483647, %v576
            %vm587 = vcmp.eq.f32.partialorder %v586, 8.507059e+37
            %v588 = vand.u32 %v576, 2147483648
            %v589 = vor.u32 1.1754944e-38, %v588
            %v590 = vsel %vm587, %v589, %v585
            %v591 = vand.u32 2147483647, %v537
            %v592 = vand.u32 2147483647, %v539
            %v593 = vand.u32 2147483647, %v541
            %v594 = vmin.f32 %v591, %v593
            %v595 = vmul.f32 1.1920929e-08, %v594
            %vm596 = vcmp.le.f32.partialorder %v592, %v595
            %v597 = vsel %vm596, 0.0, %v590
            %v598 = vmul.f32 %v597, %v597
            %v599 = vadd.f32 1.0, %v598
            %v600 = vrsqrt.pop %v599
            %v601 = vmul.f32 %v600, %v599
            %v602 = vmul.f32 %v601, %v600
            %v603 = vmul.f32 0.5, %v602
            %v604 = vsub.f32 1.5, %v603
            %v605 = vmul.f32 %v600, %v604
            %vm606 = vweird.f32 %v599
            %vm607 = vweird.f32 %v600
            %vm608 = vmor %vm606, %vm607
            %v609 = vsel %vm608, %v600, %v605
            %v610 = vmul.f32 %v597, %v609
            %v611 = vmul.f32 %v597, %v539
            %v612 = vsub.f32 %v537, %v611
            %v613 = vmul.f32 %v597, %v539
            %v614 = vadd.f32 %v541, %v613
            %s615 = smov [#allocation25]
            %616 = vst [vmem:[%s615] sm:$0xff] %v612
            %s617 = smov [#allocation26]
            %618 = vst [vmem:[%s617] sm:$0xff] %v614
            %s619 = smov %s534
            %620 = vst [vmem:[%s619] sm:$0xff] %v609
            %s621 = smov %s535
            %622 = vst [vmem:[%s621] sm:$0xff] %v610
            %s623 = smov [#allocation27]
            %v624 = vld [vmem:[%s623] ss:$0 sm:$0xff]
            %v625 = vlaneseq
            %v626 = vand.u32 %v625, 127
            %v627 = vmov %v626
            %v628 = vlaneseq
            %v629 = vshrl.u32 %v628, 7
            %v630 = vmov %v629
            %vm632 = vcmp.eq.s32.totalorder %v630, %v627
            %v633 = vsel %vm632, %v624, 0.0
            %634 = vadd.xlane.f32.xlu0 %v633
            %v635 = vpop.xlane.xlu0 %634
            %s636 = smov [#allocation29]
            %637 = vst [vmem:[%s636] sm:$0xff] %v635
            %s638 = smov [#allocation28]
            %v639 = vld [vmem:[%s638] ss:$0 sm:$0xff]
            %v640 = vlaneseq
            %v641 = vand.u32 %v640, 127
            %v642 = vmov %v641
            %v643 = vlaneseq
            %v644 = vshrl.u32 %v643, 7
            %v645 = vmov %v644
            %vm647 = vcmp.eq.s32.totalorder %v645, %v642
            %v648 = vsel %vm647, %v639, 0.0
            %649 = vadd.xlane.f32.xlu0 %v648
            %v650 = vpop.xlane.xlu0 %649
            %s651 = smov [#allocation30]
            %652 = vst [vmem:[%s651] sm:$0xff] %v650
            %s653 = smov [#allocation29]
            %v654 = vld [vmem:[%s653] sm:$0xff]
            %s655 = smov [#allocation30]
            %v656 = vld [vmem:[%s655] sm:$0xff]
            %s657 = smov [#allocation18]
            %s658 = smov [#allocation19]
            %s659 = smov [#allocation20]
            %s660 = smov [#allocation21]
            %v661 = vld [vmem:[%s657] sm:$0x3]
            %v662 = vld [vmem:[%s658] sm:$0x3]
            %v663 = vld [vmem:[%s659] sm:$0x3]
            %v664 = vld [vmem:[%s660] sm:$0x3]
            %v665 = vmul.f32 %v654, %v661
            %v666 = vmul.f32 %v656, %v663
            %v667 = vsub.f32 %v665, %v666
            %v668 = vmul.f32 %v654, %v662
            %v669 = vmul.f32 %v656, %v664
            %v670 = vsub.f32 %v668, %v669
            %v671 = vmul.f32 %v656, %v661
            %v672 = vmul.f32 %v654, %v663
            %v673 = vadd.f32 %v671, %v672
            %v674 = vmul.f32 %v656, %v662
            %v675 = vmul.f32 %v654, %v664
            %v676 = vadd.f32 %v674, %v675
            %677 = vst [vmem:[%s657] sm:$0x3] %v667
            %678 = vst [vmem:[%s658] sm:$0x3] %v670
            %679 = vst [vmem:[%s659] sm:$0x3] %v673
            %680 = vst [vmem:[%s660] sm:$0x3] %v676
            %s681 = smov [#allocation27]
            %v682 = vld [vmem:[%s681] ss:$0 sm:$0xff]
            %s683 = smov [#allocation28]
            %v684 = vld [vmem:[%s683] ss:$0 sm:$0xff]
            %s685 = smov [#allocation18]
            %s686 = smov [#allocation19]
            %s687 = smov [#allocation20]
            %s688 = smov [#allocation21]
            %v689 = vld [vmem:[%s685] sm:$0x3]
            %v690 = vld [vmem:[%s686] sm:$0x3]
            %v691 = vld [vmem:[%s687] sm:$0x3]
            %v692 = vld [vmem:[%s688] sm:$0x3]
            %v693 = vmul.f32 %v682, %v689
            %v694 = vmul.f32 %v684, %v690
            %v695 = vsub.f32 %v693, %v694
            %v696 = vmul.f32 %v684, %v689
            %v697 = vmul.f32 %v682, %v690
            %v698 = vadd.f32 %v696, %v697
            %v699 = vmul.f32 %v682, %v691
            %v700 = vmul.f32 %v684, %v692
            %v701 = vsub.f32 %v699, %v700
            %v702 = vmul.f32 %v684, %v691
            %v703 = vmul.f32 %v682, %v692
            %v704 = vadd.f32 %v702, %v703
            %705 = vst [vmem:[%s685] sm:$0x3] %v695
            %706 = vst [vmem:[%s686] sm:$0x3] %v698
            %707 = vst [vmem:[%s687] sm:$0x3] %v701
            %708 = vst [vmem:[%s688] sm:$0x3] %v704
            %s709 = smov [#allocation18]
            %s710 = smov [#allocation25]
            %v711 = vlaneseq
            %v712 = vand.u32 %v711, 127
            %v713 = vmov %v712
            %v714 = vlaneseq
            %v715 = vshrl.u32 %v714, 7
            %v716 = vmov %v715
            %v717 = vld [vmem:[%s710] ss:$0 sm:$0xff]
            %v718 = vld [vmem:[%s709] sm:$0x3]
            %vm721 = vcmp.eq.s32.totalorder %v716, %v713
            %v722 = vsel %vm721, %v717, %v718
            %723 = vst [vmem:[%s709] sm:$0x3] %v722
            %s724 = smov [#allocation19]
            %v725 = vlaneseq
            %v726 = vand.u32 %v725, 127
            %v727 = vmov %v726
            %v728 = vlaneseq
            %v729 = vshrl.u32 %v728, 7
            %v730 = vmov %v729
            %v731 = vld [vmem:[%s724] sm:$0x3]
            %vm734 = vcmp.eq.s32.totalorder %v730, %v727
            %v735 = vsel %vm734, 0.0, %v731
            %736 = vst [vmem:[%s724] sm:$0x3] %v735
            %s737 = smov [#allocation20]
            %v738 = vlaneseq
            %v739 = vand.u32 %v738, 127
            %v740 = vmov %v739
            %v741 = vlaneseq
            %v742 = vshrl.u32 %v741, 7
            %v743 = vmov %v742
            %v744 = vld [vmem:[%s737] sm:$0x3]
            %vm747 = vcmp.eq.s32.totalorder %v743, %v740
            %v748 = vsel %vm747, 0.0, %v744
            %749 = vst [vmem:[%s737] sm:$0x3] %v748
            %s750 = smov [#allocation21]
            %s751 = smov [#allocation26]
            %v752 = vlaneseq
            %v753 = vand.u32 %v752, 127
            %v754 = vmov %v753
            %v755 = vlaneseq
            %v756 = vshrl.u32 %v755, 7
            %v757 = vmov %v756
            %v758 = vld [vmem:[%s751] ss:$0 sm:$0xff]
            %v759 = vld [vmem:[%s750] sm:$0x3]
            %vm762 = vcmp.eq.s32.totalorder %v757, %v754
            %v763 = vsel %vm762, %v758, %v759
            %764 = vst [vmem:[%s750] sm:$0x3] %v763
            %s765 = smov [#allocation18]
            %s766 = smov [#allocation19]
            %v767 = vld [vmem:[%s766] sm:$0x3]
            %768 = vrot.lane.b32.xlu0 %v767, 1
            %v769 = vpop.permute.xlu0 %768
            %v770 = vld [vmem:[%s765] sm:$0x3]
            %v771 = vld [vmem:[%s765] sm:$0x3]
            %772 = vrot.lane.b32.xlu0 %v771, 1
            %v773 = vpop.permute.xlu0 %772
            %v774 = vlaneseq
            %v775 = vand.u32 %v774, 127
            %vm776 = vcmp.eq.s32.totalorder %v775, 0
            %v777 = vsel %vm776, %v771, %v773
            %v778 = vlaneseq
            %v779 = vand.u32 %v778, 127
            %vm780 = vcmp.eq.s32.totalorder %v779, 1
            %v781 = vsel %vm780, %v769, %v777
            %v782 = vlaneseq
            %v783 = vand.u32 %v782, 127
            %vm784 = vcmp.ge.s32.totalorder %v783, 0
            %vm785 = vcmp.lt.s32.totalorder %v783, 2
            %vm786 = vmand %vm784, %vm785
            %v787 = vsel %vm786, %v781, 0.0
            %v788 = vld [vmem:[%s766] sm:$0x3]
            %789 = vrot.lane.b32.xlu0 %v788, 127
            %v790 = vpop.permute.xlu0 %789
            %v791 = vlaneseq
            %v792 = vand.u32 %v791, 127
            %vm793 = vcmp.eq.s32.totalorder %v792, 1
            %v794 = vsel %vm793, %v770, %v790
            %795 = vst [vmem:[%s765] sm:$0x3] %v787
            %796 = vst [vmem:[%s766] sm:$0x3] %v794
            %s797 = smov [#allocation20]
            %s798 = smov [#allocation21]
            %v799 = vld [vmem:[%s798] sm:$0x3]
            %800 = vrot.lane.b32.xlu0 %v799, 1
            %v801 = vpop.permute.xlu0 %800
            %v802 = vld [vmem:[%s797] sm:$0x3]
            %v803 = vld [vmem:[%s797] sm:$0x3]
            %804 = vrot.lane.b32.xlu0 %v803, 1
            %v805 = vpop.permute.xlu0 %804
            %v806 = vlaneseq
            %v807 = vand.u32 %v806, 127
            %vm808 = vcmp.eq.s32.totalorder %v807, 0
            %v809 = vsel %vm808, %v803, %v805
            %v810 = vlaneseq
            %v811 = vand.u32 %v810, 127
            %vm812 = vcmp.eq.s32.totalorder %v811, 1
            %v813 = vsel %vm812, %v801, %v809
            %v814 = vlaneseq
            %v815 = vand.u32 %v814, 127
            %vm816 = vcmp.ge.s32.totalorder %v815, 0
            %vm817 = vcmp.lt.s32.totalorder %v815, 2
            %vm818 = vmand %vm816, %vm817
            %v819 = vsel %vm818, %v813, 0.0
            %v820 = vld [vmem:[%s798] sm:$0x3]
            %821 = vrot.lane.b32.xlu0 %v820, 127
            %v822 = vpop.permute.xlu0 %821
            %v823 = vlaneseq
            %v824 = vand.u32 %v823, 127
            %vm825 = vcmp.eq.s32.totalorder %v824, 1
            %v826 = vsel %vm825, %v802, %v822
            %827 = vst [vmem:[%s797] sm:$0x3] %v819
            %828 = vst [vmem:[%s798] sm:$0x3] %v826
            %s829 = smov [#allocation18]
            %s830 = smov [#allocation20]
            %v831 = vld [vmem:[%s829] ss:$0 sm:$0xff]
            %s833 = scalar_lea.vmem %s829, 4294967295
            %v834 = vld [vmem:[%s833] sm:$0x2]
            %v835 = vlaneseq
            %v836 = vshrl.u32 %v835, 7
            %vm837 = vcmp.eq.s32.totalorder %v836, 0
            %v838 = vsel %vm837, %v831, %v834
            %s839 = scalar_lea.vmem %s829, 1
            %v840 = vld [vmem:[%s839] ss:$0 sm:$0xff]
            %841 = vst [vmem:[%s829] sm:$0x3] %v838
            %v842 = vld [vmem:[%s830] ss:$0 sm:$0xff]
            %s843 = scalar_lea.vmem %s829, 1
            %844 = vst [vmem:[%s843] sm:$0x1] %v842
            %s845 = scalar_lea.vmem %s830, 1
            %v846 = vld [vmem:[%s845] sm:$0x1]
            %v847 = vlaneseq
            %v848 = vshrl.u32 %v847, 7
            %vm849 = vcmp.eq.s32.totalorder %v848, 1
            %v850 = vsel %vm849, %v840, %v846
            %v851 = vld [vmem:[%s830] ss:$0 sm:$0xff]
            %852 = vst [vmem:[%s830] sm:$0x3] %v850
            %s853 = smov [#allocation19]
            %s854 = smov [#allocation21]
            %v855 = vld [vmem:[%s853] ss:$0 sm:$0xff]
            %s857 = scalar_lea.vmem %s853, 4294967295
            %v858 = vld [vmem:[%s857] sm:$0x2]
            %v859 = vlaneseq
            %v860 = vshrl.u32 %v859, 7
            %vm861 = vcmp.eq.s32.totalorder %v860, 0
            %v862 = vsel %vm861, %v855, %v858
            %s863 = scalar_lea.vmem %s853, 1
            %v864 = vld [vmem:[%s863] ss:$0 sm:$0xff]
            %865 = vst [vmem:[%s853] sm:$0x3] %v862
            %v866 = vld [vmem:[%s854] ss:$0 sm:$0xff]
            %s867 = scalar_lea.vmem %s853, 1
            %868 = vst [vmem:[%s867] sm:$0x1] %v866
            %s869 = scalar_lea.vmem %s854, 1
            %v870 = vld [vmem:[%s869] sm:$0x1]
            %v871 = vlaneseq
            %v872 = vshrl.u32 %v871, 7
            %vm873 = vcmp.eq.s32.totalorder %v872, 1
            %v874 = vsel %vm873, %v864, %v870
            %v875 = vld [vmem:[%s854] ss:$0 sm:$0xff]
            %876 = vst [vmem:[%s854] sm:$0x3] %v874
            %s877 = smov [#allocation29]
            %v878 = vld [vmem:[%s877] sm:$0xff]
            %s879 = smov [#allocation30]
            %v880 = vld [vmem:[%s879] sm:$0xff]
            %s881 = smov [#allocation10]
            %s882 = smov [#allocation12]
            %s883 = smov [#allocation14]
            %s884 = smov [#allocation16]
            %v885 = vld [vmem:[%s881] sm:$0x3]
            %v886 = vld [vmem:[%s882] sm:$0x3]
            %v887 = vld [vmem:[%s883] sm:$0x3]
            %v888 = vld [vmem:[%s884] sm:$0x3]
            %v889 = vmul.f32 %v878, %v885
            %v890 = vmul.f32 %v880, %v887
            %v891 = vsub.f32 %v889, %v890
            %v892 = vmul.f32 %v878, %v886
            %v893 = vmul.f32 %v880, %v888
            %v894 = vsub.f32 %v892, %v893
            %v895 = vmul.f32 %v880, %v885
            %v896 = vmul.f32 %v878, %v887
            %v897 = vadd.f32 %v895, %v896
            %v898 = vmul.f32 %v880, %v886
            %v899 = vmul.f32 %v878, %v888
            %v900 = vadd.f32 %v898, %v899
            %901 = vst [vmem:[%s881] sm:$0x3] %v891
            %902 = vst [vmem:[%s882] sm:$0x3] %v894
            %903 = vst [vmem:[%s883] sm:$0x3] %v897
            %904 = vst [vmem:[%s884] sm:$0x3] %v900
            %s905 = smov [#allocation10]
            %s906 = smov [#allocation14]
            %v907 = vld [vmem:[%s905] ss:$0 sm:$0xff]
            %s909 = scalar_lea.vmem %s905, 4294967295
            %v910 = vld [vmem:[%s909] sm:$0x2]
            %v911 = vlaneseq
            %v912 = vshrl.u32 %v911, 7
            %vm913 = vcmp.eq.s32.totalorder %v912, 0
            %v914 = vsel %vm913, %v907, %v910
            %s915 = scalar_lea.vmem %s905, 1
            %v916 = vld [vmem:[%s915] ss:$0 sm:$0xff]
            %917 = vst [vmem:[%s905] sm:$0x3] %v914
            %v918 = vld [vmem:[%s906] ss:$0 sm:$0xff]
            %s919 = scalar_lea.vmem %s905, 1
            %920 = vst [vmem:[%s919] sm:$0x1] %v918
            %s921 = scalar_lea.vmem %s906, 1
            %v922 = vld [vmem:[%s921] sm:$0x1]
            %v923 = vlaneseq
            %v924 = vshrl.u32 %v923, 7
            %vm925 = vcmp.eq.s32.totalorder %v924, 1
            %v926 = vsel %vm925, %v916, %v922
            %v927 = vld [vmem:[%s906] ss:$0 sm:$0xff]
            %928 = vst [vmem:[%s906] sm:$0x3] %v926
            %s929 = smov [#allocation12]
            %s930 = smov [#allocation16]
            %v931 = vld [vmem:[%s929] ss:$0 sm:$0xff]
            %s933 = scalar_lea.vmem %s929, 4294967295
            %v934 = vld [vmem:[%s933] sm:$0x2]
            %v935 = vlaneseq
            %v936 = vshrl.u32 %v935, 7
            %vm937 = vcmp.eq.s32.totalorder %v936, 0
            %v938 = vsel %vm937, %v931, %v934
            %s939 = scalar_lea.vmem %s929, 1
            %v940 = vld [vmem:[%s939] ss:$0 sm:$0xff]
            %941 = vst [vmem:[%s929] sm:$0x3] %v938
            %v942 = vld [vmem:[%s930] ss:$0 sm:$0xff]
            %s943 = scalar_lea.vmem %s929, 1
            %944 = vst [vmem:[%s943] sm:$0x1] %v942
            %s945 = scalar_lea.vmem %s930, 1
            %v946 = vld [vmem:[%s945] sm:$0x1]
            %v947 = vlaneseq
            %v948 = vshrl.u32 %v947, 7
            %vm949 = vcmp.eq.s32.totalorder %v948, 1
            %v950 = vsel %vm949, %v940, %v946
            %v951 = vld [vmem:[%s930] ss:$0 sm:$0xff]
            %952 = vst [vmem:[%s930] sm:$0x3] %v950
          $region152: #{custom-call.2} parent=144 // loop_footer
            %s473 = sadd.s32 1, %s469
          $region153: #{custom-call.2} parent=144 // loop_footer_branch
            %468 = sbr.rel target = $region149
          $region154: #{custom-call.2} parent=144 // loop_exit
            _
          %s953 = sadd.s32 %s371, 1
        $region145: #{custom-call.2} parent=139 // loop_footer
          _
        $region146: #{custom-call.2} parent=139 // loop_footer_branch
          %370 = sbr.rel target = $region142
        $region147: #{custom-call.2} parent=139 // loop_exit
          _
        %s956 = sand.u32 %s17, 7
        %s957 = scalar_lea.vmem %s287, %s956 [#allocation8]
        %s958 = sand.u32 %s17, 7
        %s959 = scalar_lea.vmem %s293, %s958 [#allocation9]
        %s960 = smov [#allocation18]
        %s961 = smov %s957
        %v962 = vlaneseq
        %v963 = vand.u32 %v962, 127
        %v964 = vmov %v963
        %v965 = vlaneseq
        %v966 = vshrl.u32 %v965, 7
        %v967 = vmov %v966
        %v968 = vld [vmem:[%s960] sm:$0x3]
        %vm971 = vcmp.eq.s32.totalorder %v967, %v964
        %v972 = vsel %vm971, %v968, 0.0
        %v973 = vrot.slane %v972, 4
        %v974 = vadd.f32 %v972, %v973
        %v975 = vrot.slane %v974, 2
        %v976 = vadd.f32 %v974, %v975
        %v977 = vrot.slane %v976, 1
        %v978 = vadd.f32 %v976, %v977
        %979 = vst [vmem:[%s961] sm:$0x1] %v978
        %s980 = smov [#allocation21]
        %s981 = smov %s959
        %v982 = vlaneseq
        %v983 = vand.u32 %v982, 127
        %v984 = vmov %v983
        %v985 = vlaneseq
        %v986 = vshrl.u32 %v985, 7
        %v987 = vmov %v986
        %v988 = vld [vmem:[%s980] sm:$0x3]
        %vm991 = vcmp.eq.s32.totalorder %v987, %v984
        %v992 = vsel %vm991, %v988, 0.0
        %v993 = vrot.slane %v992, 4
        %v994 = vadd.f32 %v992, %v993
        %v995 = vrot.slane %v994, 2
        %v996 = vadd.f32 %v994, %v995
        %v997 = vrot.slane %v996, 1
        %v998 = vadd.f32 %v996, %v997
        %999 = vst [vmem:[%s981] sm:$0x1] %v998
        %s1001 = ssub.s32 4, 1
        %v1002 = vld [vmem:[#allocation10] sm:%s1001]
        %s1004 = ssub.s32 4, 1
        %1005 = vst [vmem:[%s297] sm:%s1004] %v1002
        %s1007 = ssub.s32 4, 1
        %v1008 = vld [vmem:[#allocation12] sm:%s1007]
        %s1010 = ssub.s32 4, 1
        %1011 = vst [vmem:[%s301] sm:%s1010] %v1008
        %s1013 = ssub.s32 4, 1
        %v1014 = vld [vmem:[#allocation14] sm:%s1013]
        %s1016 = ssub.s32 4, 1
        %1017 = vst [vmem:[%s305] sm:%s1016] %v1014
        %s1019 = ssub.s32 4, 1
        %v1020 = vld [vmem:[#allocation16] sm:%s1019]
        %s1022 = ssub.s32 4, 1
        %1023 = vst [vmem:[%s309] sm:%s1022] %v1020
        %s1024 = sand.u32 %s27, 1
        %s1025 = sand.u32 %s27, 1
        %s1026 = smul.addr %s1025, 8
        %s1027 = scalar_lea.vmem [#allocation8], %s1026
        %s1028 = sand.u32 %s55, 1
        %s1029 = sand.u32 %s55, 1
        %s1030 = smul.addr %s1029, 8
        %s1031 = scalar_lea.vmem [#allocation9], %s1030
        %s1032 = sand.u32 %s17, 1
        %s1033 = sand.u32 %s17, 1
        %s1034 = smul.addr %s1033, 2
        %s1035 = scalar_lea.vmem [#allocation11], %s1034
        %s1036 = sand.u32 %s17, 1
        %s1037 = sand.u32 %s17, 1
        %s1038 = smul.addr %s1037, 2
        %s1039 = scalar_lea.vmem [#allocation13], %s1038
        %s1040 = sand.u32 %s17, 1
        %s1041 = sand.u32 %s17, 1
        %s1042 = smul.addr %s1041, 2
        %s1043 = scalar_lea.vmem [#allocation15], %s1042
        %s1044 = sand.u32 %s17, 1
        %s1045 = sand.u32 %s17, 1
        %s1046 = smul.addr %s1045, 2
        %s1047 = scalar_lea.vmem [#allocation17], %s1046
        // Predicated region
        $region155: #{custom-call.2} parent=139 // pred_check
          %p1048 = pneg %p37
        $region156: #{custom-call.2} parent=139 // pred_check_branch
          %1050 = sbr.rel (%p1048) target = $region158
        $region157: #{custom-call.2} parent=139 // pred_region
          %s1051 = sshrl.u32 %s17, 3
          %s1052 = smul.addr %s1051, 8
          %s1053 = scalar_lea.vmem %s4, %s1052
          // Predicated region
          $region159: #{custom-call.2} parent=157 // pred_check
            _
          $region160: #{custom-call.2} parent=157 // pred_check_branch
            %1055 = sbr.rel (0) target = $region162
          $region161: #{custom-call.2} parent=157 // pred_region
            // Predicated region
            $region163: #{custom-call.2} parent=161 // pred_check
              _
            $region164: #{custom-call.2} parent=161 // pred_check_branch
              %1057 = sbr.rel (0) target = $region166
            $region165: #{custom-call.2} parent=161 // pred_region
              // Predicated region
              $region178: #{custom-call.2} parent=165 // pred_check
                _
              $region179: #{custom-call.2} parent=165 // pred_check_branch
                %1073 = sbr.rel (0) target = $region181
              $region180: #{custom-call.2} parent=165 // pred_region
                loop: start=0, step=1, limit=1
                $region182: #{custom-call.2} parent=180 // loop_pre_header
                  _
                $region183: #{custom-call.2} parent=180 // loop_header
                  %s1075 = sphi 0, %s1079
                  %p1076 = scmp.ge.s32.totalorder %s1075, 1
                  %s1080 = sphi %s1027, %s1027
                  %s1081 = sphi %s1053, %s1053
                $region184: #{custom-call.2} parent=180 // loop_header_branch
                  %1078 = sbr.rel (%p1076) target = $region188
                $region185: #{custom-call.2} parent=180 // loop_body
                  %v1082 = vld [vmem:[%s1080] sm:$0xff]
                  %1083 = vst [vmem:[%s1081] sm:$0xff] %v1082
                $region186: #{custom-call.2} parent=180 // loop_footer
                  %s1079 = sadd.s32 1, %s1075
                $region187: #{custom-call.2} parent=180 // loop_footer_branch
                  %1074 = sbr.rel target = $region183
                $region188: #{custom-call.2} parent=180 // loop_exit
                  _
              $region181: #{custom-call.2} parent=165 // pred_fallthru
                _
              // Predicated region
              $region189: #{custom-call.2} parent=165 // pred_check
                _
              $region190: #{custom-call.2} parent=165 // pred_check_branch
                %1085 = sbr.rel target = $region192
              $region191: #{custom-call.2} parent=165 // pred_region
                _
              $region192: #{custom-call.2} parent=165 // pred_fallthru
                _
            $region166: #{custom-call.2} parent=161 // pred_fallthru
              _
            // Predicated region
            $region167: #{custom-call.2} parent=161 // pred_check
              _
            $region168: #{custom-call.2} parent=161 // pred_check_branch
              %1059 = sbr.rel target = $region170
            $region169: #{custom-call.2} parent=161 // pred_region
              %s1061 = ssub.s32 256, 1
              loop: start=0, step=1, limit=1
              $region171: #{custom-call.2} parent=169 // loop_pre_header
                _
              $region172: #{custom-call.2} parent=169 // loop_header
                %s1063 = sphi 0, %s1067
                %p1064 = scmp.ge.s32.totalorder %s1063, 1
                %s1068 = sphi %s1027, %s1027
                %s1069 = sphi %s1053, %s1053
              $region173: #{custom-call.2} parent=169 // loop_header_branch
                %1066 = sbr.rel (%p1064) target = $region177
              $region174: #{custom-call.2} parent=169 // loop_body
                %v1070 = vld [vmem:[%s1068] sm:%s1061]
                %1071 = vst [vmem:[%s1069] sm:%s1061] %v1070
              $region175: #{custom-call.2} parent=169 // loop_footer
                %s1067 = sadd.s32 1, %s1063
              $region176: #{custom-call.2} parent=169 // loop_footer_branch
                %1062 = sbr.rel target = $region172
              $region177: #{custom-call.2} parent=169 // loop_exit
                _
            $region170: #{custom-call.2} parent=161 // pred_fallthru
              _
          $region162: #{custom-call.2} parent=157 // pred_fallthru
            _
          %1086 = vnop
        $region158: #{custom-call.2} parent=139 // pred_fallthru
          _
        // Predicated region
        $region193: #{custom-call.2} parent=139 // pred_check
          %p1087 = pneg %p65
        $region194: #{custom-call.2} parent=139 // pred_check_branch
          %1089 = sbr.rel (%p1087) target = $region196
        $region195: #{custom-call.2} parent=139 // pred_region
          %s1090 = sshrl.u32 %s17, 3
          %s1091 = smul.addr %s1090, 8
          %s1092 = scalar_lea.vmem %s5, %s1091
          // Predicated region
          $region197: #{custom-call.2} parent=195 // pred_check
            _
          $region198: #{custom-call.2} parent=195 // pred_check_branch
            %1094 = sbr.rel (0) target = $region200
          $region199: #{custom-call.2} parent=195 // pred_region
            // Predicated region
            $region201: #{custom-call.2} parent=199 // pred_check
              _
            $region202: #{custom-call.2} parent=199 // pred_check_branch
              %1096 = sbr.rel (0) target = $region204
            $region203: #{custom-call.2} parent=199 // pred_region
              // Predicated region
              $region216: #{custom-call.2} parent=203 // pred_check
                _
              $region217: #{custom-call.2} parent=203 // pred_check_branch
                %1112 = sbr.rel (0) target = $region219
              $region218: #{custom-call.2} parent=203 // pred_region
                loop: start=0, step=1, limit=1
                $region220: #{custom-call.2} parent=218 // loop_pre_header
                  _
                $region221: #{custom-call.2} parent=218 // loop_header
                  %s1114 = sphi 0, %s1118
                  %p1115 = scmp.ge.s32.totalorder %s1114, 1
                  %s1119 = sphi %s1031, %s1031
                  %s1120 = sphi %s1092, %s1092
                $region222: #{custom-call.2} parent=218 // loop_header_branch
                  %1117 = sbr.rel (%p1115) target = $region226
                $region223: #{custom-call.2} parent=218 // loop_body
                  %v1121 = vld [vmem:[%s1119] sm:$0xff]
                  %1122 = vst [vmem:[%s1120] sm:$0xff] %v1121
                $region224: #{custom-call.2} parent=218 // loop_footer
                  %s1118 = sadd.s32 1, %s1114
                $region225: #{custom-call.2} parent=218 // loop_footer_branch
                  %1113 = sbr.rel target = $region221
                $region226: #{custom-call.2} parent=218 // loop_exit
                  _
              $region219: #{custom-call.2} parent=203 // pred_fallthru
                _
              // Predicated region
              $region227: #{custom-call.2} parent=203 // pred_check
                _
              $region228: #{custom-call.2} parent=203 // pred_check_branch
                %1124 = sbr.rel target = $region230
              $region229: #{custom-call.2} parent=203 // pred_region
                _
              $region230: #{custom-call.2} parent=203 // pred_fallthru
                _
            $region204: #{custom-call.2} parent=199 // pred_fallthru
              _
            // Predicated region
            $region205: #{custom-call.2} parent=199 // pred_check
              _
            $region206: #{custom-call.2} parent=199 // pred_check_branch
              %1098 = sbr.rel target = $region208
            $region207: #{custom-call.2} parent=199 // pred_region
              %s1100 = ssub.s32 256, 1
              loop: start=0, step=1, limit=1
              $region209: #{custom-call.2} parent=207 // loop_pre_header
                _
              $region210: #{custom-call.2} parent=207 // loop_header
                %s1102 = sphi 0, %s1106
                %p1103 = scmp.ge.s32.totalorder %s1102, 1
                %s1107 = sphi %s1031, %s1031
                %s1108 = sphi %s1092, %s1092
              $region211: #{custom-call.2} parent=207 // loop_header_branch
                %1105 = sbr.rel (%p1103) target = $region215
              $region212: #{custom-call.2} parent=207 // loop_body
                %v1109 = vld [vmem:[%s1107] sm:%s1100]
                %1110 = vst [vmem:[%s1108] sm:%s1100] %v1109
              $region213: #{custom-call.2} parent=207 // loop_footer
                %s1106 = sadd.s32 1, %s1102
              $region214: #{custom-call.2} parent=207 // loop_footer_branch
                %1101 = sbr.rel target = $region210
              $region215: #{custom-call.2} parent=207 // loop_exit
                _
            $region208: #{custom-call.2} parent=199 // pred_fallthru
              _
          $region200: #{custom-call.2} parent=195 // pred_fallthru
            _
          %1125 = vnop
        $region196: #{custom-call.2} parent=139 // pred_fallthru
          _
        %s1126 = smul.addr %s17, 2
        %s1127 = scalar_lea.vmem %s6, %s1126
        // Predicated region
        $region231: #{custom-call.2} parent=139 // pred_check
          _
        $region232: #{custom-call.2} parent=139 // pred_check_branch
          %1129 = sbr.rel (0) target = $region234
        $region233: #{custom-call.2} parent=139 // pred_region
          // Predicated region
          $region235: #{custom-call.2} parent=233 // pred_check
            _
          $region236: #{custom-call.2} parent=233 // pred_check_branch
            %1131 = sbr.rel target = $region238
          $region237: #{custom-call.2} parent=233 // pred_region
            // Predicated region
            $region250: #{custom-call.2} parent=237 // pred_check
              _
            $region251: #{custom-call.2} parent=237 // pred_check_branch
              %1147 = sbr.rel (0) target = $region253
            $region252: #{custom-call.2} parent=237 // pred_region
              %s1149 = ssub.s32 4, 1
              loop: start=0, step=1, limit=1
              $region254: #{custom-call.2} parent=252 // loop_pre_header
                _
              $region255: #{custom-call.2} parent=252 // loop_header
                %s1151 = sphi 0, %s1155
                %p1152 = scmp.ge.s32.totalorder %s1151, 1
                %s1156 = sphi %s1035, %s1035
                %s1157 = sphi %s1127, %s1127
              $region256: #{custom-call.2} parent=252 // loop_header_branch
                %1154 = sbr.rel (%p1152) target = $region260
              $region257: #{custom-call.2} parent=252 // loop_body
                %v1158 = vld [vmem:[%s1156] sm:%s1149]
                %1159 = vst [vmem:[%s1157] sm:%s1149] %v1158
              $region258: #{custom-call.2} parent=252 // loop_footer
                %s1155 = sadd.s32 1, %s1151
              $region259: #{custom-call.2} parent=252 // loop_footer_branch
                %1150 = sbr.rel target = $region255
              $region260: #{custom-call.2} parent=252 // loop_exit
                _
            $region253: #{custom-call.2} parent=237 // pred_fallthru
              _
          $region238: #{custom-call.2} parent=233 // pred_fallthru
            _
          // Predicated region
          $region239: #{custom-call.2} parent=233 // pred_check
            _
          $region240: #{custom-call.2} parent=233 // pred_check_branch
            %1133 = sbr.rel (0) target = $region242
          $region241: #{custom-call.2} parent=233 // pred_region
            %s1135 = ssub.s32 4, 1
            loop: start=0, step=1, limit=1
            $region243: #{custom-call.2} parent=241 // loop_pre_header
              _
            $region244: #{custom-call.2} parent=241 // loop_header
              %s1137 = sphi 0, %s1141
              %p1138 = scmp.ge.s32.totalorder %s1137, 1
              %s1142 = sphi %s1035, %s1035
              %s1143 = sphi %s1127, %s1127
            $region245: #{custom-call.2} parent=241 // loop_header_branch
              %1140 = sbr.rel (%p1138) target = $region249
            $region246: #{custom-call.2} parent=241 // loop_body
              %v1144 = vld [vmem:[%s1142] sm:%s1135]
              %1145 = vst [vmem:[%s1143] sm:%s1135] %v1144
            $region247: #{custom-call.2} parent=241 // loop_footer
              %s1141 = sadd.s32 1, %s1137
            $region248: #{custom-call.2} parent=241 // loop_footer_branch
              %1136 = sbr.rel target = $region244
            $region249: #{custom-call.2} parent=241 // loop_exit
              _
          $region242: #{custom-call.2} parent=233 // pred_fallthru
            _
        $region234: #{custom-call.2} parent=139 // pred_fallthru
          _
        %1160 = vnop
        %s1161 = smul.addr %s17, 2
        %s1162 = scalar_lea.vmem %s7, %s1161
        // Predicated region
        $region261: #{custom-call.2} parent=139 // pred_check
          _
        $region262: #{custom-call.2} parent=139 // pred_check_branch
          %1164 = sbr.rel (0) target = $region264
        $region263: #{custom-call.2} parent=139 // pred_region
          // Predicated region
          $region265: #{custom-call.2} parent=263 // pred_check
            _
          $region266: #{custom-call.2} parent=263 // pred_check_branch
            %1166 = sbr.rel target = $region268
          $region267: #{custom-call.2} parent=263 // pred_region
            // Predicated region
            $region280: #{custom-call.2} parent=267 // pred_check
              _
            $region281: #{custom-call.2} parent=267 // pred_check_branch
              %1182 = sbr.rel (0) target = $region283
            $region282: #{custom-call.2} parent=267 // pred_region
              %s1184 = ssub.s32 4, 1
              loop: start=0, step=1, limit=1
              $region284: #{custom-call.2} parent=282 // loop_pre_header
                _
              $region285: #{custom-call.2} parent=282 // loop_header
                %s1186 = sphi 0, %s1190
                %p1187 = scmp.ge.s32.totalorder %s1186, 1
                %s1191 = sphi %s1039, %s1039
                %s1192 = sphi %s1162, %s1162
              $region286: #{custom-call.2} parent=282 // loop_header_branch
                %1189 = sbr.rel (%p1187) target = $region290
              $region287: #{custom-call.2} parent=282 // loop_body
                %v1193 = vld [vmem:[%s1191] sm:%s1184]
                %1194 = vst [vmem:[%s1192] sm:%s1184] %v1193
              $region288: #{custom-call.2} parent=282 // loop_footer
                %s1190 = sadd.s32 1, %s1186
              $region289: #{custom-call.2} parent=282 // loop_footer_branch
                %1185 = sbr.rel target = $region285
              $region290: #{custom-call.2} parent=282 // loop_exit
                _
            $region283: #{custom-call.2} parent=267 // pred_fallthru
              _
          $region268: #{custom-call.2} parent=263 // pred_fallthru
            _
          // Predicated region
          $region269: #{custom-call.2} parent=263 // pred_check
            _
          $region270: #{custom-call.2} parent=263 // pred_check_branch
            %1168 = sbr.rel (0) target = $region272
          $region271: #{custom-call.2} parent=263 // pred_region
            %s1170 = ssub.s32 4, 1
            loop: start=0, step=1, limit=1
            $region273: #{custom-call.2} parent=271 // loop_pre_header
              _
            $region274: #{custom-call.2} parent=271 // loop_header
              %s1172 = sphi 0, %s1176
              %p1173 = scmp.ge.s32.totalorder %s1172, 1
              %s1177 = sphi %s1039, %s1039
              %s1178 = sphi %s1162, %s1162
            $region275: #{custom-call.2} parent=271 // loop_header_branch
              %1175 = sbr.rel (%p1173) target = $region279
            $region276: #{custom-call.2} parent=271 // loop_body
              %v1179 = vld [vmem:[%s1177] sm:%s1170]
              %1180 = vst [vmem:[%s1178] sm:%s1170] %v1179
            $region277: #{custom-call.2} parent=271 // loop_footer
              %s1176 = sadd.s32 1, %s1172
            $region278: #{custom-call.2} parent=271 // loop_footer_branch
              %1171 = sbr.rel target = $region274
            $region279: #{custom-call.2} parent=271 // loop_exit
              _
          $region272: #{custom-call.2} parent=263 // pred_fallthru
            _
        $region264: #{custom-call.2} parent=139 // pred_fallthru
          _
        %1195 = vnop
        %s1196 = smul.addr %s17, 2
        %s1197 = scalar_lea.vmem %s8, %s1196
        // Predicated region
        $region291: #{custom-call.2} parent=139 // pred_check
          _
        $region292: #{custom-call.2} parent=139 // pred_check_branch
          %1199 = sbr.rel (0) target = $region294
        $region293: #{custom-call.2} parent=139 // pred_region
          // Predicated region
          $region295: #{custom-call.2} parent=293 // pred_check
            _
          $region296: #{custom-call.2} parent=293 // pred_check_branch
            %1201 = sbr.rel target = $region298
          $region297: #{custom-call.2} parent=293 // pred_region
            // Predicated region
            $region310: #{custom-call.2} parent=297 // pred_check
              _
            $region311: #{custom-call.2} parent=297 // pred_check_branch
              %1217 = sbr.rel (0) target = $region313
            $region312: #{custom-call.2} parent=297 // pred_region
              %s1219 = ssub.s32 4, 1
              loop: start=0, step=1, limit=1
              $region314: #{custom-call.2} parent=312 // loop_pre_header
                _
              $region315: #{custom-call.2} parent=312 // loop_header
                %s1221 = sphi 0, %s1225
                %p1222 = scmp.ge.s32.totalorder %s1221, 1
                %s1226 = sphi %s1043, %s1043
                %s1227 = sphi %s1197, %s1197
              $region316: #{custom-call.2} parent=312 // loop_header_branch
                %1224 = sbr.rel (%p1222) target = $region320
              $region317: #{custom-call.2} parent=312 // loop_body
                %v1228 = vld [vmem:[%s1226] sm:%s1219]
                %1229 = vst [vmem:[%s1227] sm:%s1219] %v1228
              $region318: #{custom-call.2} parent=312 // loop_footer
                %s1225 = sadd.s32 1, %s1221
              $region319: #{custom-call.2} parent=312 // loop_footer_branch
                %1220 = sbr.rel target = $region315
              $region320: #{custom-call.2} parent=312 // loop_exit
                _
            $region313: #{custom-call.2} parent=297 // pred_fallthru
              _
          $region298: #{custom-call.2} parent=293 // pred_fallthru
            _
          // Predicated region
          $region299: #{custom-call.2} parent=293 // pred_check
            _
          $region300: #{custom-call.2} parent=293 // pred_check_branch
            %1203 = sbr.rel (0) target = $region302
          $region301: #{custom-call.2} parent=293 // pred_region
            %s1205 = ssub.s32 4, 1
            loop: start=0, step=1, limit=1
            $region303: #{custom-call.2} parent=301 // loop_pre_header
              _
            $region304: #{custom-call.2} parent=301 // loop_header
              %s1207 = sphi 0, %s1211
              %p1208 = scmp.ge.s32.totalorder %s1207, 1
              %s1212 = sphi %s1043, %s1043
              %s1213 = sphi %s1197, %s1197
            $region305: #{custom-call.2} parent=301 // loop_header_branch
              %1210 = sbr.rel (%p1208) target = $region309
            $region306: #{custom-call.2} parent=301 // loop_body
              %v1214 = vld [vmem:[%s1212] sm:%s1205]
              %1215 = vst [vmem:[%s1213] sm:%s1205] %v1214
            $region307: #{custom-call.2} parent=301 // loop_footer
              %s1211 = sadd.s32 1, %s1207
            $region308: #{custom-call.2} parent=301 // loop_footer_branch
              %1206 = sbr.rel target = $region304
            $region309: #{custom-call.2} parent=301 // loop_exit
              _
          $region302: #{custom-call.2} parent=293 // pred_fallthru
            _
        $region294: #{custom-call.2} parent=139 // pred_fallthru
          _
        %1230 = vnop
        %s1231 = smul.addr %s17, 2
        %s1232 = scalar_lea.vmem %s9, %s1231
        // Predicated region
        $region321: #{custom-call.2} parent=139 // pred_check
          _
        $region322: #{custom-call.2} parent=139 // pred_check_branch
          %1234 = sbr.rel (0) target = $region324
        $region323: #{custom-call.2} parent=139 // pred_region
          // Predicated region
          $region325: #{custom-call.2} parent=323 // pred_check
            _
          $region326: #{custom-call.2} parent=323 // pred_check_branch
            %1236 = sbr.rel target = $region328
          $region327: #{custom-call.2} parent=323 // pred_region
            // Predicated region
            $region340: #{custom-call.2} parent=327 // pred_check
              _
            $region341: #{custom-call.2} parent=327 // pred_check_branch
              %1252 = sbr.rel (0) target = $region343
            $region342: #{custom-call.2} parent=327 // pred_region
              %s1254 = ssub.s32 4, 1
              loop: start=0, step=1, limit=1
              $region344: #{custom-call.2} parent=342 // loop_pre_header
                _
              $region345: #{custom-call.2} parent=342 // loop_header
                %s1256 = sphi 0, %s1260
                %p1257 = scmp.ge.s32.totalorder %s1256, 1
                %s1261 = sphi %s1047, %s1047
                %s1262 = sphi %s1232, %s1232
              $region346: #{custom-call.2} parent=342 // loop_header_branch
                %1259 = sbr.rel (%p1257) target = $region350
              $region347: #{custom-call.2} parent=342 // loop_body
                %v1263 = vld [vmem:[%s1261] sm:%s1254]
                %1264 = vst [vmem:[%s1262] sm:%s1254] %v1263
              $region348: #{custom-call.2} parent=342 // loop_footer
                %s1260 = sadd.s32 1, %s1256
              $region349: #{custom-call.2} parent=342 // loop_footer_branch
                %1255 = sbr.rel target = $region345
              $region350: #{custom-call.2} parent=342 // loop_exit
                _
            $region343: #{custom-call.2} parent=327 // pred_fallthru
              _
          $region328: #{custom-call.2} parent=323 // pred_fallthru
            _
          // Predicated region
          $region329: #{custom-call.2} parent=323 // pred_check
            _
          $region330: #{custom-call.2} parent=323 // pred_check_branch
            %1238 = sbr.rel (0) target = $region332
          $region331: #{custom-call.2} parent=323 // pred_region
            %s1240 = ssub.s32 4, 1
            loop: start=0, step=1, limit=1
            $region333: #{custom-call.2} parent=331 // loop_pre_header
              _
            $region334: #{custom-call.2} parent=331 // loop_header
              %s1242 = sphi 0, %s1246
              %p1243 = scmp.ge.s32.totalorder %s1242, 1
              %s1247 = sphi %s1047, %s1047
              %s1248 = sphi %s1232, %s1232
            $region335: #{custom-call.2} parent=331 // loop_header_branch
              %1245 = sbr.rel (%p1243) target = $region339
            $region336: #{custom-call.2} parent=331 // loop_body
              %v1249 = vld [vmem:[%s1247] sm:%s1240]
              %1250 = vst [vmem:[%s1248] sm:%s1240] %v1249
            $region337: #{custom-call.2} parent=331 // loop_footer
              %s1246 = sadd.s32 1, %s1242
            $region338: #{custom-call.2} parent=331 // loop_footer_branch
              %1241 = sbr.rel target = $region334
            $region339: #{custom-call.2} parent=331 // loop_exit
              _
          $region332: #{custom-call.2} parent=323 // pred_fallthru
            _
        $region324: #{custom-call.2} parent=139 // pred_fallthru
          _
        %1265 = vnop
      $region140: #{custom-call.2} parent=5 // pred_fallthru
        _
      %p1266 = scmp.le.s32.totalorder 2, %s12
      // Predicated region
      $region351: #{custom-call.2} parent=5 // pred_check
        %p1267 = pneg %p1266
      $region352: #{custom-call.2} parent=5 // pred_check_branch
        %1269 = sbr.rel (%p1267) target = $region354
      $region353: #{custom-call.2} parent=5 // pred_region
        %s1270 = ssub.s32 %s12, 2
        // Predicated region
        $region355: #{custom-call.2} parent=353 // pred_check
          %p1271 = pneg %p43
        $region356: #{custom-call.2} parent=353 // pred_check_branch
          %1273 = sbr.rel (%p1271) target = $region358
        $region357: #{custom-call.2} parent=353 // pred_region
          %s1274 = sand.u32 %s28, 1
          %s1275 = sand.u32 %s28, 1
          %s1276 = smul.addr %s1275, 8
          %s1277 = scalar_lea.vmem [#allocation8], %s1276
        $region358: #{custom-call.2} parent=353 // pred_fallthru
          _
        // Predicated region
        $region359: #{custom-call.2} parent=353 // pred_check
          %p1278 = pneg %p71
        $region360: #{custom-call.2} parent=353 // pred_check_branch
          %1280 = sbr.rel (%p1278) target = $region362
        $region361: #{custom-call.2} parent=353 // pred_region
          %s1281 = sand.u32 %s56, 1
          %s1282 = sand.u32 %s56, 1
          %s1283 = smul.addr %s1282, 8
          %s1284 = scalar_lea.vmem [#allocation9], %s1283
        $region362: #{custom-call.2} parent=353 // pred_fallthru
          _
        %s1285 = sand.u32 %s18, 1
        %s1286 = sand.u32 %s18, 1
        %s1287 = smul.addr %s1286, 2
        %s1288 = scalar_lea.vmem [#allocation11], %s1287
        %s1289 = sand.u32 %s18, 1
        %s1290 = sand.u32 %s18, 1
        %s1291 = smul.addr %s1290, 2
        %s1292 = scalar_lea.vmem [#allocation13], %s1291
        %s1293 = sand.u32 %s18, 1
        %s1294 = sand.u32 %s18, 1
        %s1295 = smul.addr %s1294, 2
        %s1296 = scalar_lea.vmem [#allocation15], %s1295
        %s1297 = sand.u32 %s18, 1
        %s1298 = sand.u32 %s18, 1
        %s1299 = smul.addr %s1298, 2
        %s1300 = scalar_lea.vmem [#allocation17], %s1299
      $region354: #{custom-call.2} parent=5 // pred_fallthru
        _
    $region6: #{custom-call.2} parent=1 // loop_footer
      %s16 = sadd.s32 1, %s12
    $region7: #{custom-call.2} parent=1 // loop_footer_branch
      %11 = sbr.rel target = $region3
    $region8: #{custom-call.2} parent=1 // loop_exit
      _

// kernel: squeeze.3
$region0: #{squeeze.3}
  %s0 = inlined_call_operand.vmem [shape: f32[8,1,4], index: 0, kind: input, shape index: {}]
  %s1 = inlined_call_operand.vmem [shape: f32[2,4,4], index: 1, kind: output, shape index: {}]
  $region1: #{squeeze.3} parent=0
    #allocation0 [shape = 'u8[16384]{0}', space=vmem, size = 0x4000, scoped, tag = 'scoped mem for output reshape']
    #allocation1 [shape = 'u8[4096]{0}', space=vmem, size = 0x1000, scoped, tag = 'scoped mem for input reshape']
    %s3 = ssub.s32 16, 1
    %v4 = vld [vmem:[%s0] sm:%s3]
    %5 = vst [vmem:[#allocation1] sm:%s3] %v4
    %v6 = vld [vmem:[#allocation1] sm:$0xf]
    %vm7 = vcmask 31744
    %8 = vst.msk [vmem:[#allocation0] ss:$8 sm:$0xf] %vm7, %v6
    %v9 = vld [vmem:[#allocation1] sm:$0xf]
    %10 = vrot.lane.b32.xlu0 %v9, 124
    %v11 = vpop.permute.xlu0 %10
    %vm12 = vcmask 31744
    %s13 = scalar_lea.vmem [#allocation0], 1
    %14 = vst.msk [vmem:[%s13] ss:$8 sm:$0xf] %vm12, %v11
    %s16 = ssub.s32 4, 1
    %v17 = vld [vmem:[#allocation0] sm:%s16]
    %s19 = ssub.s32 4, 1
    %20 = vst [vmem:[%s1] sm:%s19] %v17
    %s21 = scalar_lea.vmem [#allocation0], 8
    %v22 = vld [vmem:[%s21] sm:%s16]
    %s24 = ssub.s32 4, 1
    %s25 = scalar_lea.vmem %s1, 2
    %26 = vst [vmem:[%s25] sm:%s24] %v22
    %s27 = scalar_lea.vmem [#allocation0], 16
    %v28 = vld [vmem:[%s27] sm:%s16]
    %s30 = ssub.s32 4, 1
    %s31 = scalar_lea.vmem %s1, 4
    %32 = vst [vmem:[%s31] sm:%s30] %v28
    %s33 = scalar_lea.vmem [#allocation0], 24
    %v34 = vld [vmem:[%s33] sm:%s16]
    %s36 = ssub.s32 4, 1
    %s37 = scalar_lea.vmem %s1, 6
    %38 = vst [vmem:[%s37] sm:%s36] %v34

// kernel: pose_att_router.2
$region0: #{pose_att_router.2}
  #allocation0 [shape = 'u32[]', space=smem, size = 0x4, offset = 0x4, fixed_abs, tag = 'smem constant byte address 0x4 - core index']
  #allocation1 [shape = 'u32[72,128]{1,0:T(1,128)}', space=vmem, size = 0x9000, scoped, tag = 'internal scratch']
  %s0 = inlined_call_operand.vmem [shape: f32[2,8,4], index: 0, kind: input, shape index: {}]
  %s1 = inlined_call_operand.vmem [shape: f32[2,4,8,4], index: 1, kind: input, shape index: {}]
  %s2 = inlined_call_operand.vmem [shape: f32[2,16,4], index: 2, kind: output, shape index: {}]
  %s3 = sld [smem:[#allocation0]]
  $region41: #{pose_att_router.2} parent=0
    _
  %s5 = ssub.s32 1, %s3
  %s6 = scalar_select 0, %s5, %s3
  loop: start=0, step=1, limit=4
  $region2: #{pose_att_router.2} parent=0 // loop_pre_header
    _
  $region3: #{pose_att_router.2} parent=0 // loop_header
    %s8 = sphi 0, %s12
    %p9 = scmp.ge.s32.totalorder %s8, 4
    %s18 = sphi 0, %s20
    %s21 = sphi 0, %s18
    %s22 = sphi 0, %s21
    %s38 = sphi 0, %s22
    %s44 = sphi 0, %s46
    %s47 = sphi 0, %s44
    %s48 = sphi 0, %s47
    %s64 = sphi 0, %s48
    %s70 = sphi 0, %s72
    %s73 = sphi 0, %s70
    %s74 = sphi 0, %s73
    %s90 = sphi 0, %s74
  $region4: #{pose_att_router.2} parent=0 // loop_header_branch
    %11 = sbr.rel (%p9) target = $region8
  $region5: #{pose_att_router.2} parent=0 // loop_body
    %s13 = ssub.s32 %s8, 1
    %s14 = ssub.s32 %s8, 2
    %s15 = sadd.s32 %s8, 1
    %s16 = ssub.s32 %s8, %s15
    %p17 = scmp.eq.s32.totalorder %s16, 0
    %s19 = sadd.s32 %s18, 1
    %s20 = scalar_select %p17, %s18, %s19
    %p23 = pneg %p17
    %p24 = scmp.eq.s32.totalorder %s8, 1
    %p25 = por %p23, %p24
    %p26 = scmp.ne.s32.totalorder %s18, %s21
    %p27 = scmp.eq.s32.totalorder %s8, 0
    %p28 = por %p26, %p27
    %p29 = scmp.ne.s32.totalorder %s18, %s21
    %p30 = scmp.eq.s32.totalorder %s13, 1
    %p31 = por %p29, %p30
    %p32 = scmp.ne.s32.totalorder %s21, %s22
    %p33 = scmp.eq.s32.totalorder %s13, 0
    %p34 = por %p32, %p33
    %p35 = scmp.ne.s32.totalorder %s21, %s22
    %p36 = scmp.eq.s32.totalorder %s14, 1
    %p37 = por %p35, %p36
    %p39 = scmp.ne.s32.totalorder %s22, %s38
    %p40 = scmp.eq.s32.totalorder %s14, 0
    %p41 = por %p39, %p40
    %s42 = ssub.s32 %s8, %s15
    %p43 = scmp.eq.s32.totalorder %s42, 0
    %s45 = sadd.s32 %s44, 1
    %s46 = scalar_select %p43, %s44, %s45
    %p49 = pneg %p43
    %p50 = scmp.eq.s32.totalorder %s8, 1
    %p51 = por %p49, %p50
    %p52 = scmp.ne.s32.totalorder %s44, %s47
    %p53 = scmp.eq.s32.totalorder %s8, 0
    %p54 = por %p52, %p53
    %p55 = scmp.ne.s32.totalorder %s44, %s47
    %p56 = scmp.eq.s32.totalorder %s13, 1
    %p57 = por %p55, %p56
    %p58 = scmp.ne.s32.totalorder %s47, %s48
    %p59 = scmp.eq.s32.totalorder %s13, 0
    %p60 = por %p58, %p59
    %p61 = scmp.ne.s32.totalorder %s47, %s48
    %p62 = scmp.eq.s32.totalorder %s14, 1
    %p63 = por %p61, %p62
    %p65 = scmp.ne.s32.totalorder %s48, %s64
    %p66 = scmp.eq.s32.totalorder %s14, 0
    %p67 = por %p65, %p66
    %s68 = ssub.s32 %s8, %s15
    %p69 = scmp.eq.s32.totalorder %s68, 0
    %s71 = sadd.s32 %s70, 1
    %s72 = scalar_select %p69, %s70, %s71
    %p75 = pneg %p69
    %p76 = scmp.eq.s32.totalorder %s8, 1
    %p77 = por %p75, %p76
    %p78 = scmp.ne.s32.totalorder %s70, %s73
    %p79 = scmp.eq.s32.totalorder %s8, 0
    %p80 = por %p78, %p79
    %p81 = scmp.ne.s32.totalorder %s70, %s73
    %p82 = scmp.eq.s32.totalorder %s13, 1
    %p83 = por %p81, %p82
    %p84 = scmp.ne.s32.totalorder %s73, %s74
    %p85 = scmp.eq.s32.totalorder %s13, 0
    %p86 = por %p84, %p85
    %p87 = scmp.ne.s32.totalorder %s73, %s74
    %p88 = scmp.eq.s32.totalorder %s14, 1
    %p89 = por %p87, %p88
    %p91 = scmp.ne.s32.totalorder %s74, %s90
    %p92 = scmp.eq.s32.totalorder %s14, 0
    %p93 = por %p91, %p92
    %p94 = scmp.le.s32.totalorder 1, %s8
    %p95 = scmp.lt.s32.totalorder %s8, 3
    %p96 = pnand %p94, %p95
    %p97 = pneg %p96
    // Predicated region
    $region9: #{pose_att_router.2} parent=5 // pred_check
      _
    $region10: #{pose_att_router.2} parent=5 // pred_check_branch
      %99 = sbr.rel (%p96) target = $region12
    $region11: #{pose_att_router.2} parent=5 // pred_region
      %s100 = ssub.s32 %s8, 1
    $region12: #{pose_att_router.2} parent=5 // pred_fallthru
      _
    %p101 = scmp.lt.s32.totalorder %s8, 2
    // Predicated region
    $region13: #{pose_att_router.2} parent=5 // pred_check
      %p102 = pneg %p101
    $region14: #{pose_att_router.2} parent=5 // pred_check_branch
      %104 = sbr.rel (%p102) target = $region16
    $region15: #{pose_att_router.2} parent=5 // pred_region
      // Predicated region
      $region17: #{pose_att_router.2} parent=15 // pred_check
        %p105 = pneg %p28
      $region18: #{pose_att_router.2} parent=15 // pred_check_branch
        %107 = sbr.rel (%p105) target = $region20
      $region19: #{pose_att_router.2} parent=15 // pred_region
        %p108 = scmp.lt.s32.totalorder %s8, 1
        %s109 = scalar_select %p108, %s8, 1
        %s110 = smul.addr %s109, 8
        %s111 = scalar_lea.vmem %s0, %s110
      $region20: #{pose_att_router.2} parent=15 // pred_fallthru
        _
      // Predicated region
      $region21: #{pose_att_router.2} parent=15 // pred_check
        %p112 = pneg %p54
      $region22: #{pose_att_router.2} parent=15 // pred_check_branch
        %114 = sbr.rel (%p112) target = $region24
      $region23: #{pose_att_router.2} parent=15 // pred_region
        %p115 = scmp.lt.s32.totalorder %s8, 1
        %s116 = scalar_select %p115, %s8, 1
        %s117 = smul.addr %s116, 4
        %s118 = smul.addr %s117, 8
        %s119 = scalar_lea.vmem %s1, %s118
      $region24: #{pose_att_router.2} parent=15 // pred_fallthru
        _
    $region16: #{pose_att_router.2} parent=5 // pred_fallthru
      _
    %p120 = scmp.le.s32.totalorder 1, %s8
    %p121 = scmp.lt.s32.totalorder %s8, 3
    %p122 = pnand %p120, %p121
    %p123 = pneg %p122
    // Predicated region
    $region25: #{pose_att_router.2} parent=5 // pred_check
      _
    $region26: #{pose_att_router.2} parent=5 // pred_check_branch
      %125 = sbr.rel (%p122) target = $region28
    $region27: #{pose_att_router.2} parent=5 // pred_region
      %s126 = ssub.s32 %s8, 1
      %p127 = scmp.lt.s32.totalorder %s13, 1
      %s128 = scalar_select %p127, %s13, 1
      %s129 = smul.addr %s128, 8
      %s130 = scalar_lea.vmem %s0, %s129
      %p131 = pneg %p34
      %p132 = pneg %p31
      %p133 = scmp.lt.s32.totalorder %s13, 1
      %s134 = scalar_select %p133, %s13, 1
      %s135 = smul.addr %s134, 4
      %s136 = smul.addr %s135, 8
      %s137 = scalar_lea.vmem %s1, %s136
      %p138 = pneg %p60
      %p139 = pneg %p57
      %p140 = pneg %p86
      %p141 = pneg %p83
      %p142 = scmp.lt.s32.totalorder %s13, 1
      %s143 = scalar_select %p142, %s13, 1
      %s144 = smul.addr %s143, 2
      %s145 = smul.addr %s144, 8
      %s146 = scalar_lea.vmem %s2, %s145
      %p147 = scmp.lt.s32.totalorder %s13, 1
      %s148 = scalar_select %p147, %s13, 1
      %s149 = smul.addr %s148, 8
      %s150 = scalar_lea.vmem %s0, %s149
      %p151 = scmp.lt.s32.totalorder %s13, 1
      %s152 = scalar_select %p151, %s13, 1
      %s153 = smul.addr %s152, 4
      %s154 = smul.addr %s153, 8
      %s155 = scalar_lea.vmem %s1, %s154
      %p156 = scmp.lt.s32.totalorder %s13, 1
      %s157 = scalar_select %p156, %s13, 1
      %s158 = smul.addr %s157, 2
      %s159 = smul.addr %s158, 8
      %s160 = scalar_lea.vmem %s2, %s159
      %v161 = vld [vmem:[%s150] sm:$0xff]
      %v162 = vld [vmem:[%s155] sm:$0xff]
      %s163 = scalar_lea.vmem %s155, 8
      %v164 = vld [vmem:[%s163] sm:$0xff]
      %s165 = scalar_lea.vmem %s155, 16
      %v166 = vld [vmem:[%s165] sm:$0xff]
      %s167 = scalar_lea.vmem %s155, 24
      %v168 = vld [vmem:[%s167] sm:$0xff]
      %v169 = vmul.f32 %v161, %v162
      %v170 = vmul.f32 %v169, %v162
      %vm171 = vcmask 31744
      %v172 = vsel %vm171, %v170, 0.0
      %v173 = vrot.slane %v172, 4
      %v174 = vadd.f32 %v172, %v173
      %v175 = vrot.slane %v174, 2
      %v176 = vadd.f32 %v174, %v175
      %v177 = vrot.slane %v176, 1
      %v178 = vadd.f32 %v176, %v177
      %v179 = vmul.f32 %v169, %v164
      %v180 = vsel %vm171, %v179, 0.0
      %v181 = vrot.slane %v180, 4
      %v182 = vadd.f32 %v180, %v181
      %v183 = vrot.slane %v182, 2
      %v184 = vadd.f32 %v182, %v183
      %v185 = vrot.slane %v184, 1
      %v186 = vadd.f32 %v184, %v185
      %v187 = vmul.f32 %v169, %v166
      %v188 = vsel %vm171, %v187, 0.0
      %v189 = vrot.slane %v188, 4
      %v190 = vadd.f32 %v188, %v189
      %v191 = vrot.slane %v190, 2
      %v192 = vadd.f32 %v190, %v191
      %v193 = vrot.slane %v192, 1
      %v194 = vadd.f32 %v192, %v193
      %v195 = vmul.f32 %v169, %v168
      %v196 = vsel %vm171, %v195, 0.0
      %v197 = vrot.slane %v196, 4
      %v198 = vadd.f32 %v196, %v197
      %v199 = vrot.slane %v198, 2
      %v200 = vadd.f32 %v198, %v199
      %v201 = vrot.slane %v200, 1
      %v202 = vadd.f32 %v200, %v201
      %v203 = vmul.f32 %v161, %v164
      %v204 = vmul.f32 %v203, %v164
      %v205 = vsel %vm171, %v204, 0.0
      %v206 = vrot.slane %v205, 4
      %v207 = vadd.f32 %v205, %v206
      %v208 = vrot.slane %v207, 2
      %v209 = vadd.f32 %v207, %v208
      %v210 = vrot.slane %v209, 1
      %v211 = vadd.f32 %v209, %v210
      %v212 = vmul.f32 %v203, %v166
      %v213 = vsel %vm171, %v212, 0.0
      %v214 = vrot.slane %v213, 4
      %v215 = vadd.f32 %v213, %v214
      %v216 = vrot.slane %v215, 2
      %v217 = vadd.f32 %v215, %v216
      %v218 = vrot.slane %v217, 1
      %v219 = vadd.f32 %v217, %v218
      %v220 = vmul.f32 %v203, %v168
      %v221 = vsel %vm171, %v220, 0.0
      %v222 = vrot.slane %v221, 4
      %v223 = vadd.f32 %v221, %v222
      %v224 = vrot.slane %v223, 2
      %v225 = vadd.f32 %v223, %v224
      %v226 = vrot.slane %v225, 1
      %v227 = vadd.f32 %v225, %v226
      %v228 = vmul.f32 %v161, %v166
      %v229 = vmul.f32 %v228, %v166
      %v230 = vsel %vm171, %v229, 0.0
      %v231 = vrot.slane %v230, 4
      %v232 = vadd.f32 %v230, %v231
      %v233 = vrot.slane %v232, 2
      %v234 = vadd.f32 %v232, %v233
      %v235 = vrot.slane %v234, 1
      %v236 = vadd.f32 %v234, %v235
      %v237 = vmul.f32 %v228, %v168
      %v238 = vsel %vm171, %v237, 0.0
      %v239 = vrot.slane %v238, 4
      %v240 = vadd.f32 %v238, %v239
      %v241 = vrot.slane %v240, 2
      %v242 = vadd.f32 %v240, %v241
      %v243 = vrot.slane %v242, 1
      %v244 = vadd.f32 %v242, %v243
      %v245 = vmul.f32 %v161, %v168
      %v246 = vmul.f32 %v245, %v168
      %v247 = vsel %vm171, %v246, 0.0
      %v248 = vrot.slane %v247, 4
      %v249 = vadd.f32 %v247, %v248
      %v250 = vrot.slane %v249, 2
      %v251 = vadd.f32 %v249, %v250
      %v252 = vrot.slane %v251, 1
      %v253 = vadd.f32 %v251, %v252
      %vm254 = vcmask 1040384
      %v255 = vsel %vm254, %v178, %v186
      %vm256 = vcmask 1041408
      %v257 = vsel %vm256, %v255, %v194
      %vm258 = vcmask 1042432
      %v259 = vsel %vm258, %v257, %v202
      %vm260 = vcmask 1043456
      %v261 = vsel %vm260, %v259, %v186
      %vm262 = vcmask 1044480
      %v263 = vsel %vm262, %v261, %v211
      %vm264 = vcmask 1045504
      %v265 = vsel %vm264, %v263, %v219
      %vm266 = vcmask 1046528
      %v267 = vsel %vm266, %v265, %v227
      %v268 = vsel %vm254, %v194, %v219
      %v269 = vsel %vm256, %v268, %v236
      %v270 = vsel %vm258, %v269, %v244
      %v271 = vsel %vm260, %v270, %v202
      %v272 = vsel %vm262, %v271, %v227
      %v273 = vsel %vm264, %v272, %v244
      %v274 = vsel %vm266, %v273, %v253
      %275 = vst.msk [vmem:[%s160] sm:$0xff] %vm171, %v267
      %276 = vst.msk [vmem:[%s160 + $0x8] sm:$0xff] %vm171, %v274
      %p277 = scmp.lt.s32.totalorder %s13, 1
      %s278 = scalar_select %p277, %s13, 1
      %s279 = smul.addr %s278, 2
      %s280 = smul.addr %s279, 8
      %s281 = scalar_lea.vmem %s2, %s280
      // Predicated region
      $region29: #{pose_att_router.2} parent=27 // pred_check
        %p282 = pneg %p83
      $region30: #{pose_att_router.2} parent=27 // pred_check_branch
        %284 = sbr.rel (%p282) target = $region32
      $region31: #{pose_att_router.2} parent=27 // pred_region
        _
      $region32: #{pose_att_router.2} parent=27 // pred_fallthru
        _
    $region28: #{pose_att_router.2} parent=5 // pred_fallthru
      _
    %p285 = scmp.le.s32.totalorder 2, %s8
    // Predicated region
    $region33: #{pose_att_router.2} parent=5 // pred_check
      %p286 = pneg %p285
    $region34: #{pose_att_router.2} parent=5 // pred_check_branch
      %288 = sbr.rel (%p286) target = $region36
    $region35: #{pose_att_router.2} parent=5 // pred_region
      %s289 = ssub.s32 %s8, 2
      // Predicated region
      $region37: #{pose_att_router.2} parent=35 // pred_check
        %p290 = pneg %p89
      $region38: #{pose_att_router.2} parent=35 // pred_check_branch
        %292 = sbr.rel (%p290) target = $region40
      $region39: #{pose_att_router.2} parent=35 // pred_region
        %p293 = scmp.lt.s32.totalorder %s14, 1
        %s294 = scalar_select %p293, %s14, 1
        %s295 = smul.addr %s294, 2
        %s296 = smul.addr %s295, 8
        %s297 = scalar_lea.vmem %s2, %s296
      $region40: #{pose_att_router.2} parent=35 // pred_fallthru
        _
    $region36: #{pose_att_router.2} parent=5 // pred_fallthru
      _
  $region6: #{pose_att_router.2} parent=0 // loop_footer
    %s12 = sadd.s32 1, %s8
  $region7: #{pose_att_router.2} parent=0 // loop_footer_branch
    %7 = sbr.rel target = $region3
  $region8: #{pose_att_router.2} parent=0 // loop_exit
    _

// kernel: pose_att_router.3
$region0: #{pose_att_router.3}
  #allocation0 [shape = 'u32[]', space=smem, size = 0x4, offset = 0x4, fixed_abs, tag = 'smem constant byte address 0x4 - core index']
  #allocation1 [shape = 'u32[72,128]{1,0:T(1,128)}', space=vmem, size = 0x9000, scoped, tag = 'internal scratch']
  #allocation2 [shape = 'f32[8,4]{1,0:T(8,128)}', space=vmem, size = 0x1000, scoped, tag = 'scratch operand']
  %s0 = inlined_call_operand.vmem [shape: f32[2,4,8,4], index: 0, kind: input, shape index: {}]
  %s1 = inlined_call_operand.vmem [shape: f32[2,4,4], index: 1, kind: input, shape index: {}]
  %s2 = inlined_call_operand.vmem [shape: bf16[2,8,4,16], index: 2, kind: input, shape index: {}]
  %s3 = inlined_call_operand.hbm [shape: f32[2,4,16], index: 3, kind: output, shape index: {}]
  %s4 = sld [smem:[#allocation0]]
  $region49: #{pose_att_router.3} parent=0
    _
  %s6 = ssub.s32 1, %s4
  %s7 = scalar_select 0, %s6, %s4
  $region1: #{pose_att_router.3} parent=0
    #allocation3 [shape = 'u8[4096]{0}', space=vmem, size = 0x1000, scoped, tag = 'output window, operand 0']
    #allocation4 [shape = 's32[2]{0}', space=sflag, size = 0x8, scoped, tag = 'scoped memory for pose_att_router.3']
    %8 = vsyncpa [#allocation4], 0
    %s9 = scalar_lea.sflag [#allocation4], 1
    %10 = vsyncpa %s9, 0
    loop: start=0, step=1, limit=4
    $region2: #{pose_att_router.3} parent=1 // loop_pre_header
      _
    $region3: #{pose_att_router.3} parent=1 // loop_header
      %s12 = sphi 0, %s16
      %p13 = scmp.ge.s32.totalorder %s12, 4
      %s19 = sphi 0, %s31
      %s20 = sphi 0, %s27
      %s21 = sphi 0, %s19
      %s22 = sphi 0, %s20
      %s23 = sphi 0, %s21
      %s24 = sphi 0, %s22
      %s34 = sphi 0, %s36
      %s37 = sphi 0, %s34
      %s38 = sphi 0, %s37
      %s54 = sphi 0, %s38
      %s60 = sphi 0, %s62
      %s63 = sphi 0, %s60
      %s64 = sphi 0, %s63
      %s80 = sphi 0, %s64
      %s88 = sphi 0, %s90
      %s91 = sphi 0, %s88
      %s92 = sphi 0, %s91
      %s108 = sphi 0, %s92
      %s116 = sphi 0, %s118
      %s119 = sphi 0, %s116
      %s120 = sphi 0, %s119
      %s136 = sphi 0, %s120
    $region4: #{pose_att_router.3} parent=1 // loop_header_branch
      %15 = sbr.rel (%p13) target = $region8
    $region5: #{pose_att_router.3} parent=1 // loop_body
      %s17 = ssub.s32 %s12, 1
      %s18 = ssub.s32 %s12, 2
      %s25 = sadd.s32 1, %s20
      %p26 = scmp.ge.s32.totalorder %s25, 1
      %s27 = scalar_select %p26, 0, %s25
      %s28 = sadd.s32 1, %s19
      %s29 = scalar_select %p26, %s28, %s19
      %p30 = scmp.ge.s32.totalorder %s29, 2
      %s31 = scalar_select %p30, 0, %s29
      %s32 = ssub.s32 %s19, %s31
      %p33 = scmp.eq.s32.totalorder %s32, 0
      %s35 = sadd.s32 %s34, 1
      %s36 = scalar_select %p33, %s34, %s35
      %p39 = pneg %p33
      %p40 = scmp.eq.s32.totalorder %s12, 1
      %p41 = por %p39, %p40
      %p42 = scmp.ne.s32.totalorder %s34, %s37
      %p43 = scmp.eq.s32.totalorder %s12, 0
      %p44 = por %p42, %p43
      %p45 = scmp.ne.s32.totalorder %s34, %s37
      %p46 = scmp.eq.s32.totalorder %s17, 1
      %p47 = por %p45, %p46
      %p48 = scmp.ne.s32.totalorder %s37, %s38
      %p49 = scmp.eq.s32.totalorder %s17, 0
      %p50 = por %p48, %p49
      %p51 = scmp.ne.s32.totalorder %s37, %s38
      %p52 = scmp.eq.s32.totalorder %s18, 1
      %p53 = por %p51, %p52
      %p55 = scmp.ne.s32.totalorder %s38, %s54
      %p56 = scmp.eq.s32.totalorder %s18, 0
      %p57 = por %p55, %p56
      %s58 = ssub.s32 %s19, %s31
      %p59 = scmp.eq.s32.totalorder %s58, 0
      %s61 = sadd.s32 %s60, 1
      %s62 = scalar_select %p59, %s60, %s61
      %p65 = pneg %p59
      %p66 = scmp.eq.s32.totalorder %s12, 1
      %p67 = por %p65, %p66
      %p68 = scmp.ne.s32.totalorder %s60, %s63
      %p69 = scmp.eq.s32.totalorder %s12, 0
      %p70 = por %p68, %p69
      %p71 = scmp.ne.s32.totalorder %s60, %s63
      %p72 = scmp.eq.s32.totalorder %s17, 1
      %p73 = por %p71, %p72
      %p74 = scmp.ne.s32.totalorder %s63, %s64
      %p75 = scmp.eq.s32.totalorder %s17, 0
      %p76 = por %p74, %p75
      %p77 = scmp.ne.s32.totalorder %s63, %s64
      %p78 = scmp.eq.s32.totalorder %s18, 1
      %p79 = por %p77, %p78
      %p81 = scmp.ne.s32.totalorder %s64, %s80
      %p82 = scmp.eq.s32.totalorder %s18, 0
      %p83 = por %p81, %p82
      %s84 = ssub.s32 %s19, %s31
      %s85 = ssub.s32 %s20, %s27
      %s86 = sor.u32 %s84, %s85
      %p87 = scmp.eq.s32.totalorder %s86, 0
      %s89 = sadd.s32 %s88, 1
      %s90 = scalar_select %p87, %s88, %s89
      %p93 = pneg %p87
      %p94 = scmp.eq.s32.totalorder %s12, 1
      %p95 = por %p93, %p94
      %p96 = scmp.ne.s32.totalorder %s88, %s91
      %p97 = scmp.eq.s32.totalorder %s12, 0
      %p98 = por %p96, %p97
      %p99 = scmp.ne.s32.totalorder %s88, %s91
      %p100 = scmp.eq.s32.totalorder %s17, 1
      %p101 = por %p99, %p100
      %p102 = scmp.ne.s32.totalorder %s91, %s92
      %p103 = scmp.eq.s32.totalorder %s17, 0
      %p104 = por %p102, %p103
      %p105 = scmp.ne.s32.totalorder %s91, %s92
      %p106 = scmp.eq.s32.totalorder %s18, 1
      %p107 = por %p105, %p106
      %p109 = scmp.ne.s32.totalorder %s92, %s108
      %p110 = scmp.eq.s32.totalorder %s18, 0
      %p111 = por %p109, %p110
      %s112 = ssub.s32 %s19, %s31
      %s113 = ssub.s32 %s20, %s27
      %s114 = sor.u32 %s112, %s113
      %p115 = scmp.eq.s32.totalorder %s114, 0
      %s117 = sadd.s32 %s116, 1
      %s118 = scalar_select %p115, %s116, %s117
      %p121 = pneg %p115
      %p122 = scmp.eq.s32.totalorder %s12, 1
      %p123 = por %p121, %p122
      %p124 = scmp.ne.s32.totalorder %s116, %s119
      %p125 = scmp.eq.s32.totalorder %s12, 0
      %p126 = por %p124, %p125
      %p127 = scmp.ne.s32.totalorder %s116, %s119
      %p128 = scmp.eq.s32.totalorder %s17, 1
      %p129 = por %p127, %p128
      %p130 = scmp.ne.s32.totalorder %s119, %s120
      %p131 = scmp.eq.s32.totalorder %s17, 0
      %p132 = por %p130, %p131
      %p133 = scmp.ne.s32.totalorder %s119, %s120
      %p134 = scmp.eq.s32.totalorder %s18, 1
      %p135 = por %p133, %p134
      %p137 = scmp.ne.s32.totalorder %s120, %s136
      %p138 = scmp.eq.s32.totalorder %s18, 0
      %p139 = por %p137, %p138
      %p140 = scmp.le.s32.totalorder 1, %s12
      %p141 = scmp.lt.s32.totalorder %s12, 3
      %p142 = pnand %p140, %p141
      %p143 = pneg %p142
      // Predicated region
      $region9: #{pose_att_router.3} parent=5 // pred_check
        _
      $region10: #{pose_att_router.3} parent=5 // pred_check_branch
        %145 = sbr.rel (%p142) target = $region12
      $region11: #{pose_att_router.3} parent=5 // pred_region
        %s146 = ssub.s32 %s12, 1
      $region12: #{pose_att_router.3} parent=5 // pred_fallthru
        _
      %p147 = scmp.lt.s32.totalorder %s12, 2
      // Predicated region
      $region13: #{pose_att_router.3} parent=5 // pred_check
        %p148 = pneg %p147
      $region14: #{pose_att_router.3} parent=5 // pred_check_branch
        %150 = sbr.rel (%p148) target = $region16
      $region15: #{pose_att_router.3} parent=5 // pred_region
        // Predicated region
        $region17: #{pose_att_router.3} parent=15 // pred_check
          %p151 = pneg %p44
        $region18: #{pose_att_router.3} parent=15 // pred_check_branch
          %153 = sbr.rel (%p151) target = $region20
        $region19: #{pose_att_router.3} parent=15 // pred_region
          %p154 = scmp.lt.s32.totalorder %s19, 1
          %s155 = scalar_select %p154, %s19, 1
          %s156 = smul.addr %s155, 4
          %s157 = smul.addr %s156, 8
          %s158 = scalar_lea.vmem %s0, %s157
        $region20: #{pose_att_router.3} parent=15 // pred_fallthru
          _
        // Predicated region
        $region21: #{pose_att_router.3} parent=15 // pred_check
          %p159 = pneg %p70
        $region22: #{pose_att_router.3} parent=15 // pred_check_branch
          %161 = sbr.rel (%p159) target = $region24
        $region23: #{pose_att_router.3} parent=15 // pred_region
          %p162 = scmp.lt.s32.totalorder %s19, 1
          %s163 = scalar_select %p162, %s19, 1
          %s164 = smul.addr %s163, 4
          %s165 = scalar_lea.vmem %s1, %s164
        $region24: #{pose_att_router.3} parent=15 // pred_fallthru
          _
        // Predicated region
        $region25: #{pose_att_router.3} parent=15 // pred_check
          %p166 = pneg %p98
        $region26: #{pose_att_router.3} parent=15 // pred_check_branch
          %168 = sbr.rel (%p166) target = $region28
        $region27: #{pose_att_router.3} parent=15 // pred_region
          %p169 = scmp.lt.s32.totalorder %s19, 1
          %s170 = scalar_select %p169, %s19, 1
          %p171 = scmp.lt.s32.totalorder %s20, 0
          %s172 = scalar_select %p171, %s20, 0
          %s173 = smul.addr %s170, 8
          %s174 = sadd.s32 %s172, %s173
          %s175 = smul.addr %s174, 2
          %s176 = scalar_lea.vmem %s2, %s175
        $region28: #{pose_att_router.3} parent=15 // pred_fallthru
          _
      $region16: #{pose_att_router.3} parent=5 // pred_fallthru
        _
      %p177 = scmp.le.s32.totalorder 1, %s12
      %p178 = scmp.lt.s32.totalorder %s12, 3
      %p179 = pnand %p177, %p178
      %p180 = pneg %p179
      // Predicated region
      $region29: #{pose_att_router.3} parent=5 // pred_check
        _
      $region30: #{pose_att_router.3} parent=5 // pred_check_branch
        %182 = sbr.rel (%p179) target = $region32
      $region31: #{pose_att_router.3} parent=5 // pred_region
        %s183 = ssub.s32 %s12, 1
        %p184 = scmp.lt.s32.totalorder %s21, 1
        %s185 = scalar_select %p184, %s21, 1
        %s186 = smul.addr %s185, 4
        %s187 = smul.addr %s186, 8
        %s188 = scalar_lea.vmem %s0, %s187
        %p189 = pneg %p50
        %p190 = pneg %p47
        %p191 = scmp.lt.s32.totalorder %s21, 1
        %s192 = scalar_select %p191, %s21, 1
        %s193 = smul.addr %s192, 4
        %s194 = scalar_lea.vmem %s1, %s193
        %p195 = pneg %p76
        %p196 = pneg %p73
        %p197 = scmp.lt.s32.totalorder %s21, 1
        %s198 = scalar_select %p197, %s21, 1
        %p199 = scmp.lt.s32.totalorder %s22, 0
        %s200 = scalar_select %p199, %s22, 0
        %s201 = smul.addr %s198, 8
        %s202 = sadd.s32 %s200, %s201
        %s203 = smul.addr %s202, 2
        %s204 = scalar_lea.vmem %s2, %s203
        %p205 = pneg %p104
        %p206 = pneg %p101
        %p207 = pneg %p132
        %p208 = pneg %p129
        %s209 = sand.u32 %s119, 1
        %s210 = scalar_lea.sflag [#allocation4], %s209
        %s211 = sand.u32 %s119, 1
        %s212 = smul.addr %s211, 4
        %s213 = scalar_lea.vmem [#allocation3], %s212
        %p214 = scmp.lt.s32.totalorder %s21, 1
        %s215 = scalar_select %p214, %s21, 1
        %s216 = smul.addr %s215, 4
        %s217 = smul.addr %s216, 8
        %s218 = scalar_lea.vmem %s0, %s217
        %p219 = scmp.lt.s32.totalorder %s21, 1
        %s220 = scalar_select %p219, %s21, 1
        %s221 = smul.addr %s220, 4
        %s222 = scalar_lea.vmem %s1, %s221
        %p223 = scmp.lt.s32.totalorder %s21, 1
        %s224 = scalar_select %p223, %s21, 1
        %p225 = scmp.lt.s32.totalorder %s22, 0
        %s226 = scalar_select %p225, %s22, 0
        %s227 = smul.addr %s224, 8
        %s228 = sadd.s32 %s226, %s227
        %s229 = smul.addr %s228, 2
        %s230 = scalar_lea.vmem %s2, %s229
        %p231 = scmp.eq.s32.totalorder %s22, 0
        // Predicated region
        $region33: #{pose_att_router.3} parent=31 // pred_check
          %p232 = pneg %p231
        $region34: #{pose_att_router.3} parent=31 // pred_check_branch
          %234 = sbr.rel (%p232) target = $region36
        $region35: #{pose_att_router.3} parent=31 // pred_region
          %v235 = vld [vmem:[%s222] sm:$0xf]
          %v236 = vld [vmem:[%s218] sm:$0xff]
          %v237 = vperm.slane %v235, 0
          %v238 = vmul.f32 %v236, %v237
          %s239 = scalar_lea.vmem %s218, 8
          %v240 = vld [vmem:[%s239] sm:$0xff]
          %v241 = vperm.slane %v235, 1
          %v242 = vmul.f32 %v240, %v241
          %v243 = vadd.f32 %v238, %v242
          %s244 = scalar_lea.vmem %s218, 16
          %v245 = vld [vmem:[%s244] sm:$0xff]
          %v246 = vperm.slane %v235, 2
          %v247 = vmul.f32 %v245, %v246
          %v248 = vadd.f32 %v243, %v247
          %s249 = scalar_lea.vmem %s218, 24
          %v250 = vld [vmem:[%s249] sm:$0xff]
          %v251 = vperm.slane %v235, 3
          %v252 = vmul.f32 %v250, %v251
          %v253 = vadd.f32 %v248, %v252
          %v254 = vand.u32 2147483647, %v253
          %v255 = vmin.f32 %v254, 0.9999
          %v256 = vmul.f32 %v255, -0.0012624911
          %v257 = vadd.f32 %v256, 0.00667009
          %v258 = vmul.f32 %v257, %v255
          %v259 = vadd.f32 %v258, -0.017088126
          %v260 = vmul.f32 %v259, %v255
          %v261 = vadd.f32 %v260, 0.03089188
          %v262 = vmul.f32 %v261, %v255
          %v263 = vadd.f32 %v262, -0.050174303
          %v264 = vmul.f32 %v263, %v255
          %v265 = vadd.f32 %v264, 0.08897899
          %v266 = vmul.f32 %v265, %v255
          %v267 = vadd.f32 %v266, -0.2145988
          %v268 = vmul.f32 %v267, %v255
          %v269 = vadd.f32 %v268, 1.5707963
          %v270 = vsub.f32 1.0, %v255
          %v271 = vrsqrt.pop %v270
          %v272 = vmul.f32 %v271, %v270
          %v273 = vmul.f32 %v272, %v271
          %v274 = vmul.f32 0.5, %v273
          %v275 = vsub.f32 1.5, %v274
          %v276 = vmul.f32 %v271, %v275
          %v277 = vmul.f32 %v270, %v276
          %vm278 = vcmp.eq.f32.partialorder %v270, inf
          %v279 = vsel %vm278, %v270, %v277
          %vm280 = vcmp.eq.f32.partialorder %v270, 0.0
          %v281 = vand.u32 %v270, 2147483648
          %v282 = vsel %vm280, %v281, %v279
          %v283 = vmul.f32 %v282, %v269
          %v284 = vmul.f32 %v283, 0.63661975
          %v285 = vrcp.pop %v284
          %v286 = vmul.f32 %v284, %v285
          %v287 = vsub.f32 1.0, %v286
          %v288 = vmul.f32 %v285, %v287
          %v289 = vadd.f32 %v285, %v288
          %vm290 = vweird.f32 %v284
          %vm291 = vweird.f32 %v285
          %vm292 = vmor %vm290, %vm291
          %v293 = vsel %vm292, %v285, %v289
          %v294 = vand.u32 2147483647, %v284
          %vm295 = vcmp.eq.f32.partialorder %v294, 8.507059e+37
          %v296 = vand.u32 %v284, 2147483648
          %v297 = vor.u32 1.1754944e-38, %v296
          %v298 = vsel %vm295, %v297, %v293
          %v299 = vmul.f32 1.0, %v298
          %vm300 = vcmask 31744
          %v301 = vsel %vm300, %v299, -inf
          %v302 = vrot.slane %v301, 4
          %v303 = vmax.f32 %v301, %v302
          %v304 = vrot.slane %v303, 2
          %v305 = vmax.f32 %v303, %v304
          %v306 = vrot.slane %v305, 1
          %v307 = vmax.f32 %v305, %v306
          %v308 = vsub.f32 %v299, %v307
          %v309 = vmul.f32 %v308, 1.442695
          %v310 = vpow.pop %v309
          %v311 = vsel %vm300, %v310, 0.0
          %v312 = vrot.slane %v311, 4
          %v313 = vadd.f32 %v311, %v312
          %v314 = vrot.slane %v313, 2
          %v315 = vadd.f32 %v313, %v314
          %v316 = vrot.slane %v315, 1
          %v317 = vadd.f32 %v315, %v316
          %v318 = vrcp.pop %v317
          %v319 = vmul.f32 %v317, %v318
          %v320 = vsub.f32 1.0, %v319
          %v321 = vmul.f32 %v318, %v320
          %v322 = vadd.f32 %v318, %v321
          %vm323 = vweird.f32 %v317
          %vm324 = vweird.f32 %v318
          %vm325 = vmor %vm323, %vm324
          %v326 = vsel %vm325, %v318, %v322
          %v327 = vand.u32 2147483647, %v317
          %vm328 = vcmp.eq.f32.partialorder %v327, 8.507059e+37
          %v329 = vand.u32 %v317, 2147483648
          %v330 = vor.u32 1.1754944e-38, %v329
          %v331 = vsel %vm328, %v330, %v326
          %v332 = vmul.f32 %v310, %v331
          %333 = vst.msk [vmem:[#allocation2] sm:$0xff] %vm300, %v332
        $region36: #{pose_att_router.3} parent=31 // pred_fallthru
          _
        %v334 = vld [vmem:[#allocation2] sm:$0xff]
        %v335 = vld [vmem:[%s230] sm:$0x3]
        %v336 = vld [vmem:[%s230 + $0x2] sm:$0x3]
        %v337 = vld [vmem:[%s230 + $0x4] sm:$0x3]
        %v338 = vld [vmem:[%s230 + $0x6] sm:$0x3]
        %v339 = vld [vmem:[%s230 + $0x8] sm:$0x3]
        %v340 = vld [vmem:[%s230 + $0xa] sm:$0x3]
        %v341 = vld [vmem:[%s230 + $0xc] sm:$0x3]
        %v342 = vld [vmem:[%s230 + $0xe] sm:$0x3]
        %v343 = vperm.slane %v334, 0
        %v344 = vlaneseq
        %v345 = vshrl.u32 %v344, 7
        %347 = vset.pattern.permute.xlu0 %v345
        %348 = vperm.xlu0 %347, %v343
        %v349 = vpop.permute.xlu0 %348
        %v350 = vperm.slane %v334, 1
        %v351 = vlaneseq
        %v352 = vshrl.u32 %v351, 7
        %354 = vset.pattern.permute.xlu0 %v352
        %355 = vperm.xlu0 %354, %v350
        %v356 = vpop.permute.xlu0 %355
        %v357 = vperm.slane %v334, 2
        %v358 = vlaneseq
        %v359 = vshrl.u32 %v358, 7
        %361 = vset.pattern.permute.xlu0 %v359
        %362 = vperm.xlu0 %361, %v357
        %v363 = vpop.permute.xlu0 %362
        %v364 = vperm.slane %v334, 3
        %v365 = vlaneseq
        %v366 = vshrl.u32 %v365, 7
        %368 = vset.pattern.permute.xlu0 %v366
        %369 = vperm.xlu0 %368, %v364
        %v370 = vpop.permute.xlu0 %369
        %v371 = vperm.slane %v334, 4
        %v372 = vlaneseq
        %v373 = vshrl.u32 %v372, 7
        %375 = vset.pattern.permute.xlu0 %v373
        %376 = vperm.xlu0 %375, %v371
        %v377 = vpop.permute.xlu0 %376
        %v378 = vperm.slane %v334, 5
        %v379 = vlaneseq
        %v380 = vshrl.u32 %v379, 7
        %382 = vset.pattern.permute.xlu0 %v380
        %383 = vperm.xlu0 %382, %v378
        %v384 = vpop.permute.xlu0 %383
        %v385 = vperm.slane %v334, 6
        %v386 = vlaneseq
        %v387 = vshrl.u32 %v386, 7
        %389 = vset.pattern.permute.xlu0 %v387
        %390 = vperm.xlu0 %389, %v385
        %v391 = vpop.permute.xlu0 %390
        %v392 = vperm.slane %v334, 7
        %v393 = vlaneseq
        %v394 = vshrl.u32 %v393, 7
        %396 = vset.pattern.permute.xlu0 %v394
        %397 = vperm.xlu0 %396, %v392
        %v398 = vpop.permute.xlu0 %397
        %v399 = vunpack.c.l.bf16 %v335
        %v400 = vunpack.c.l.bf16 %v336
        %v401 = vunpack.c.l.bf16 %v337
        %v402 = vunpack.c.l.bf16 %v338
        %v403 = vunpack.c.l.bf16 %v339
        %v404 = vunpack.c.l.bf16 %v340
        %v405 = vunpack.c.l.bf16 %v341
        %v406 = vunpack.c.l.bf16 %v342
        %v407 = vmul.f32 %v349, %v399
        %v408 = vmul.f32 %v356, %v400
        %v409 = vmul.f32 %v363, %v401
        %v410 = vmul.f32 %v370, %v402
        %v411 = vmul.f32 %v377, %v403
        %v412 = vmul.f32 %v384, %v404
        %v413 = vmul.f32 %v391, %v405
        %v414 = vmul.f32 %v398, %v406
        %vm415 = vcmask 125952
        %v416 = vsel %vm415, %v407, 0.0
        %v417 = vsel %vm415, %v408, 0.0
        %v418 = vadd.f32 %v416, %v417
        %v419 = vsel %vm415, %v409, 0.0
        %v420 = vadd.f32 %v418, %v419
        %v421 = vsel %vm415, %v410, 0.0
        %v422 = vadd.f32 %v420, %v421
        %v423 = vsel %vm415, %v411, 0.0
        %v424 = vadd.f32 %v422, %v423
        %v425 = vsel %vm415, %v412, 0.0
        %v426 = vadd.f32 %v424, %v425
        %v427 = vsel %vm415, %v413, 0.0
        %v428 = vadd.f32 %v426, %v427
        %v429 = vsel %vm415, %v414, 0.0
        %v430 = vadd.f32 %v428, %v429
        %v431 = vmul.f32 %v430, 0.125
        %432 = vst.msk [vmem:[%s213] sm:$0xf] %vm415, %v431
        %s433 = sand.u32 %s119, 1
        %s434 = scalar_lea.sflag [#allocation4], %s433
        %s435 = sand.u32 %s119, 1
        %s436 = smul.addr %s435, 4
        %s437 = scalar_lea.vmem [#allocation3], %s436
        // Predicated region
        $region37: #{pose_att_router.3} parent=31 // pred_check
          %p438 = pneg %p129
        $region38: #{pose_att_router.3} parent=31 // pred_check_branch
          %440 = sbr.rel (%p438) target = $region40
        $region39: #{pose_att_router.3} parent=31 // pred_region
          %442 = vsyncadd %s434, 0
          %s443 = sadd.s32 %s22, %s21
          %s444 = smul.addr %s443, 4
          %s445 = scalar_lea.hbm %s3, %s444
          %s447 = sshll.u32 %s437, 4
          %s448 = int_to_ptr.vmem [resolvable:$true] %s447
          %s449 = sshll.u32 %s445, 4
          %s450 = int_to_ptr.hbm [resolvable:$true] %s449
          %452 = dma.vmem_to_hbm [thread:$0]  %s448, 64, %s450, %s434
        $region40: #{pose_att_router.3} parent=31 // pred_fallthru
          _
      $region32: #{pose_att_router.3} parent=5 // pred_fallthru
        _
      %p453 = scmp.le.s32.totalorder 2, %s12
      // Predicated region
      $region41: #{pose_att_router.3} parent=5 // pred_check
        %p454 = pneg %p453
      $region42: #{pose_att_router.3} parent=5 // pred_check_branch
        %456 = sbr.rel (%p454) target = $region44
      $region43: #{pose_att_router.3} parent=5 // pred_region
        %s457 = ssub.s32 %s12, 2
        // Predicated region
        $region45: #{pose_att_router.3} parent=43 // pred_check
          %p458 = pneg %p135
        $region46: #{pose_att_router.3} parent=43 // pred_check_branch
          %460 = sbr.rel (%p458) target = $region48
        $region47: #{pose_att_router.3} parent=43 // pred_region
          %s461 = sand.u32 %s120, 1
          %s462 = scalar_lea.sflag [#allocation4], %s461
          %s463 = sand.u32 %s120, 1
          %s464 = smul.addr %s463, 4
          %s465 = scalar_lea.vmem [#allocation3], %s464
          %467 = dma.done %s462, 64
        $region48: #{pose_att_router.3} parent=43 // pred_fallthru
          _
      $region44: #{pose_att_router.3} parent=5 // pred_fallthru
        _
    $region6: #{pose_att_router.3} parent=1 // loop_footer
      %s16 = sadd.s32 1, %s12
    $region7: #{pose_att_router.3} parent=1 // loop_footer_branch
      %11 = sbr.rel target = $region3
    $region8: #{pose_att_router.3} parent=1 // loop_exit
      _
    %468 = vsyncpa [#allocation4], 1
    %s469 = scalar_lea.sflag [#allocation4], 1
    %470 = vsyncpa %s469, 1

</llo_original>
